<compile_context>
chip_gen: v7x
topology: tpu7x:2x2x1
jax: 0.10.0
libtpu: 0.0.40
codegen_flags: <defaults>
</compile_context>

<pallas_src>
import functools
import math

import jax
import jax.numpy as jnp
from jax.experimental import pallas as pl
from jax.experimental.pallas import tpu as pltpu


# ----- PoincareBall constants (match manifolds/poincare.py for float32) -----
MIN_NORM = 1e-15           # PoincareBall.min_norm
PROJ_EPS = 4e-3            # PoincareBall.eps[torch.float32]
# f32-representable stand-in for torch's 1 - 1e-15 artanh clamp (which rounds to 1.0
# in f32): saturates artanh slightly earlier for points extremely close to the boundary.
ARTANH_CLAMP = 1.0 - 1e-7
TANH_CLAMP = 15.0


def _tanh(z):
    return jnp.tanh(jnp.clip(z, -TANH_CLAMP, TANH_CLAMP))


def _artanh(z):
    z = jnp.clip(z, -ARTANH_CLAMP, ARTANH_CLAMP)
    return 0.5 * jnp.log((1.0 + z) / (1.0 - z))


# ---------------- pure-JAX manifold helpers (reference + parameter prep) -----
def _row_norm(v):
    return jnp.maximum(jnp.sqrt(jnp.sum(v * v, axis=-1, keepdims=True)), MIN_NORM)


def _proj(y, c):
    maxnorm = (1.0 - PROJ_EPS) / math.sqrt(c)
    n = _row_norm(y)
    return jnp.where(n > maxnorm, y / n * maxnorm, y)


def _expmap0(u, c):
    sqrt_c = math.sqrt(c)
    un = _row_norm(u)
    return _tanh(sqrt_c * un) * u / (sqrt_c * un)


def _mobius_add(x, y, c):
    x2 = jnp.sum(x * x, axis=-1, keepdims=True)
    y2 = jnp.sum(y * y, axis=-1, keepdims=True)
    xy = jnp.sum(x * y, axis=-1, keepdims=True)
    num = (1.0 + 2.0 * c * xy + c * y2) * x + (1.0 - c * x2) * y
    denom = jnp.maximum(1.0 + 2.0 * c * xy + c * c * x2 * y2, MIN_NORM)
    return num / denom


def _mobius_matvec_from_mx(x, mx, c):
    sqrt_c = math.sqrt(c)
    x_norm = _row_norm(x)
    mx_norm = _row_norm(mx)
    res = _tanh(mx_norm / x_norm * _artanh(sqrt_c * x_norm)) * mx / (mx_norm * sqrt_c)
    all_zero = jnp.max(jnp.abs(mx), axis=-1, keepdims=True) == 0.0
    return jnp.where(all_zero, 0.0, res)


# --------------------------------- kernel -----------------------------------
def hyp_linear_kernel(x_ref, wt_ref, hb_ref, hb_sq_ref, o_ref, *, c):
    """One row tile: mobius_matvec -> proj -> mobius_add(precomputed bias) -> proj."""
    sqrt_c = math.sqrt(c)
    maxnorm = (1.0 - PROJ_EPS) / sqrt_c

    x = x_ref[...]           # [TM, F_in_p]    streamed row tile
    wt = wt_ref[...]         # [F_in_p, F_out_p]  W^T, VMEM-resident
    hyp_bias = hb_ref[...]   # [1, F_out_p]    precomputed proj(expmap0(b, c), c)
    y2 = hb_sq_ref[...]      # [1, 1]          precomputed ||hyp_bias||^2

    # ---- mobius_matvec(W, x, c): one MXU matmul + row-wise hyperbolic rescale ----
    mx = jnp.dot(x, wt, preferred_element_type=jnp.float32)      # [TM, F_out_p]

    x_sq = jnp.sum(x * x, axis=-1, keepdims=True)                # [TM, 1]
    x_norm = jnp.maximum(jnp.sqrt(x_sq), MIN_NORM)
    mx_sq = jnp.sum(mx * mx, axis=-1, keepdims=True)             # [TM, 1]
    mx_norm = jnp.maximum(jnp.sqrt(mx_sq), MIN_NORM)

    # factor = tanh((||mx||/||x||) * artanh(sqrt_c*||x||)) / (sqrt_c*||mx||)  -- [TM,1]
    ratio = mx_norm * pl.reciprocal(x_norm)
    factor = _tanh(ratio * _artanh(sqrt_c * x_norm)) * pl.reciprocal(sqrt_c * mx_norm)
    res = mx * factor                                            # wide multiply only
    # zero-row guard reuses mx_sq (no separate max|mx| reduce)
    res = jnp.where(mx_sq == 0.0, 0.0, res)

    # ---- proj(res): scale-multiply form; reuse the clipped norm for mobius_add x2 ----
    res_norm = jnp.maximum(
        jnp.sqrt(jnp.sum(res * res, axis=-1, keepdims=True)), MIN_NORM)
    scale = jnp.where(res_norm > maxnorm, maxnorm * pl.reciprocal(res_norm), 1.0)
    res = res * scale
    clipped = jnp.minimum(res_norm, maxnorm)
    x2 = clipped * clipped                                       # ||proj(res)||^2

    # ---- mobius_add(res, hyp_bias, c) with precomputed y2; implicit [1,F_out] bcast ----
    xy = jnp.sum(res * hyp_bias, axis=-1, keepdims=True)         # [TM, 1]
    coef_x = 1.0 + 2.0 * c * xy + c * y2                         # [TM, 1]
    coef_y = 1.0 - c * x2                                        # [TM, 1]
    denom = jnp.maximum(1.0 + 2.0 * c * xy + (c * c) * x2 * y2, MIN_NORM)
    out = (coef_x * res + coef_y * hyp_bias) * pl.reciprocal(denom)

    # ---- final proj, lane-dense store ----
    out_norm = jnp.maximum(
        jnp.sqrt(jnp.sum(out * out, axis=-1, keepdims=True)), MIN_NORM)
    out_scale = jnp.where(out_norm > maxnorm, maxnorm * pl.reciprocal(out_norm), 1.0)
    o_ref[...] = (out * out_scale).astype(o_ref.dtype)


# -------------------------------- wrapper ------------------------------------
def _round_up(a, m):
    return (a + m - 1) // m * m


def _cdiv(a, b):
    return (a + b - 1) // b


def _vmem_budget_bytes():
    """Per-generation VMEM budget: ~100 MiB on v5e/v6e (128 MiB), 48 MiB on v7x (64 MiB)."""
    cap = None
    try:
        info = pltpu.get_tpu_info()
        cap = getattr(info, "vmem_capacity_bytes", None)
    except Exception:
        cap = None
    if cap is None:
        cap = 64 << 20                       # conservative (v7x per-TC)
    if cap >= (100 << 20):
        return 100 << 20                     # v5e / v6e
    return 48 << 20                          # v7x headroom


def _pick_tiling(n, f_in_p, f_out_p, budget, tm_max):
    """Row-tile size + tile count bounding both VMEM working set and padding waste."""
    n8 = _round_up(max(n, 1), 8)

    def working_set(tm):
        b = 4  # f32
        stream = 2 * tm * (f_in_p + f_out_p) * b           # double-buffered x / out tiles
        resident = (f_in_p * f_out_p + f_out_p + 1) * b    # W^T + hyp_bias + y2 (1 buffer)
        temps = 6 * tm * max(f_in_p, f_out_p) * b          # live f32 elementwise temporaries
        return stream + resident + temps + (2 << 20)       # misc headroom

    tm = _round_up(min(tm_max, n8), 8)
    while tm > 8 and working_set(tm) > budget:
        tm = _round_up(max(tm // 2, 8), 8)

    # Balance tiles so padding waste stays < 8 rows/tile (instead of padding N up to a
    # multiple of tm_max); prefer an even tile count for a balanced v7x megacore split.
    num_tiles = _cdiv(n8, tm)
    if num_tiles > 2 and num_tiles % 2 == 1:
        num_tiles += 1
    tm = _round_up(_cdiv(n8, num_tiles), 8)
    n_p = num_tiles * tm
    return tm, num_tiles, n_p


def prepare_hyp_linear_params(weight, bias, c, f_in_p, f_out_p):
    """One-time parameter prep (hoist/cache outside the per-call hot path).

    Returns W^T zero-padded to lane-dense shape, the hyperbolic bias
    hyp_bias = proj(expmap0(proj_tan0(b, c), c), c) (computed once in plain JAX),
    and its squared norm y2 (so the kernel never re-reduces a constant).
    """
    f_out, f_in = weight.shape
    if f_in == f_in_p and f_out == f_out_p:
        wt_p = weight.T
    else:
        wt_p = jnp.zeros((f_in_p, f_out_p), weight.dtype).at[:f_in, :f_out].set(weight.T)

    hb = _proj(_expmap0(bias.reshape(1, -1).astype(jnp.float32), c), c)   # [1, f_out]
    hb_sq = jnp.sum(hb * hb, axis=-1, keepdims=True)                      # [1, 1]
    if f_out == f_out_p:
        hb_p = hb
    else:
        hb_p = jnp.zeros((1, f_out_p), jnp.float32).at[:, :f_out].set(hb)
    return wt_p, hb_p, hb_sq


def hyp_linear(x, weight, bias, c, *, tm_max=1024):
    """HypLinear forward (PoincareBall, inference).

    x: [N, F_in] points on the ball; weight: [F_out, F_in]; bias: [F_out].
    """
    n, f_in = x.shape
    f_out, f_in_w = weight.shape
    assert f_in_w == f_in
    assert bias.shape == (f_out,)
    c = float(c)

    # Lane-dense (multiple-of-128) feature dims: zero padding is exact for every op used
    # (matmul, row norms, Mobius ops all ignore zero columns). Do NOT add non-zero-
    # preserving ops before a norm without revisiting this.
    f_in_p = _round_up(f_in, 128)
    f_out_p = _round_up(f_out, 128)

    budget = _vmem_budget_bytes()
    tm, num_tiles, n_p = _pick_tiling(n, f_in_p, f_out_p, budget, tm_max)

    # Skip host-side pad copies when already aligned.
    if n == n_p and f_in == f_in_p:
        x_p = x
    else:
        x_p = jnp.zeros((n_p, f_in_p), x.dtype).at[:n, :f_in].set(x)

    wt_p, hb_p, hb_sq = prepare_hyp_linear_params(weight, bias, c, f_in_p, f_out_p)

    def run(single_buffer_const):
        # Constant-index inputs never revisit a new block -> request a single pipeline
        # buffer to halve their VMEM footprint (matters inside v7x's 64 MiB per-TC VMEM).
        const_kw = {"pipeline_mode": pl.Buffered(1)} if single_buffer_const else {}
        return pl.pallas_call(
            functools.partial(hyp_linear_kernel, c=c),
            out_shape=jax.ShapeDtypeStruct((n_p, f_out_p), x.dtype),
            grid=(num_tiles,),
            in_specs=[
                pl.BlockSpec((tm, f_in_p), lambda i: (i, 0)),                # x: streamed
                pl.BlockSpec((f_in_p, f_out_p), lambda i: (0, 0), **const_kw),  # W^T: resident
                pl.BlockSpec((1, f_out_p), lambda i: (0, 0), **const_kw),       # hyp_bias
                pl.BlockSpec((1, 1), lambda i: (0, 0), **const_kw),             # ||hyp_bias||^2
            ],
            out_specs=pl.BlockSpec((tm, f_out_p), lambda i: (i, 0)),
            compiler_params=pltpu.CompilerParams(
                dimension_semantics=("parallel",),   # independent row tiles (v7x megacore)
                vmem_limit_bytes=budget,
            ),
        )(x_p, wt_p, hb_p, hb_sq)

    try:
        out_p = run(single_buffer_const=True)
    except Exception:
        # pipeline_mode=Buffered(1) unsupported on this jax/libtpu build -> default buffering.
        out_p = run(single_buffer_const=False)

    if n == n_p and f_out == f_out_p:
        return out_p
    return out_p[:n, :f_out]


# ------------------------------- reference -----------------------------------
def hyp_linear_reference(x, weight, bias, c):
    mx = x @ weight.T
    res = _proj(_mobius_matvec_from_mx(x, mx, c), c)
    hyp_bias = _proj(_expmap0(bias.reshape(1, -1), c), c)
    res = _mobius_add(res, hyp_bias, c)
    return _proj(res, c)


if __name__ == "__main__":
    key = jax.random.PRNGKey(0)

    def make_case(key, n, in_features, out_features, c):
        kx, kw, kb = jax.random.split(key, 3)
        # Inputs are points on the Poincare ball (expmap0 of small tangent vectors).
        x_tan = 0.2 * jax.random.normal(kx, (n, in_features), dtype=jnp.float32)
        x = _proj(_expmap0(x_tan, c), c)
        # xavier_uniform_(gain=sqrt(2)) on the [out, in] weight (as reset_parameters);
        # small nonzero bias so the hyperbolic-bias branch is exercised.
        gain = math.sqrt(2.0)
        limit = gain * math.sqrt(6.0 / (in_features + out_features))
        weight = jax.random.uniform(kw, (out_features, in_features), dtype=jnp.float32,
                                    minval=-limit, maxval=limit)
        bias = 0.05 * jax.random.normal(kb, (out_features,), dtype=jnp.float32)
        return x, weight, bias

    cases = [
        (64, 48, 32, 1.0),   # feature padding 48->128, 32->128
        (50, 40, 72, 0.5),   # row count not a multiple of 8 + different curvature
    ]
    keys = jax.random.split(key, len(cases))

    for (n, fi, fo, c), k in zip(cases, keys):
        x, weight, bias = make_case(k, n, fi, fo, c)
        out = jax.block_until_ready(hyp_linear(x, weight, bias, c))
        ref = hyp_linear_reference(x, weight, bias, c)
        assert out.shape == (n, fo)
        assert bool(jnp.all(jnp.isfinite(out)))
        assert jnp.allclose(out, ref, atol=1e-4, rtol=1e-4), (
            f"mismatch vs reference (N={n}, in={fi}, out={fo}, c={c}): "
            f"max abs diff = {float(jnp.max(jnp.abs(out - ref)))}")

    print("KERNEL_OK")
</pallas_src>

<mosaic_0001>
module attributes {stable_mosaic.version = 11 : i64} {
  func.func @hyp_linear_kernel(%arg0: i32, %arg1: memref<64x128xf32, #tpu.memory_space<vmem>>, %arg2: memref<128x128xf32, #tpu.memory_space<vmem>>, %arg3: memref<1x128xf32, #tpu.memory_space<vmem>>, %arg4: memref<1x1xf32, #tpu.memory_space<vmem>>, %arg5: memref<64x128xf32, #tpu.memory_space<vmem>>) attributes {dimension_semantics = [#tpu.dimension_semantics<parallel>], iteration_bounds = array<i64: 1>, scalar_prefetch = 0 : i64, scratch_operands = 0 : i64, tpu.core_type = #tpu.core_type<tc>, window_params = [{transform_indices = @transform_0, window_bounds = array<i64: 64, 128>}, {pipeline_mode = #tpu.pipeline_mode<synchronous>, transform_indices = @transform_1, window_bounds = array<i64: 128, 128>}, {pipeline_mode = #tpu.pipeline_mode<synchronous>, transform_indices = @transform_2, window_bounds = array<i64: 1, 128>}, {pipeline_mode = #tpu.pipeline_mode<synchronous>, transform_indices = @transform_3, window_bounds = array<i64: 1, 1>}, {transform_indices = @transform_4, window_bounds = array<i64: 64, 128>}]} {
    %c0 = arith.constant 0 : index
    %c0_0 = arith.constant 0 : index
    %0 = vector.load %arg1[%c0, %c0_0] : memref<64x128xf32, #tpu.memory_space<vmem>>, vector<64x128xf32>
    %c0_1 = arith.constant 0 : index
    %c0_2 = arith.constant 0 : index
    %1 = vector.load %arg2[%c0_1, %c0_2] : memref<128x128xf32, #tpu.memory_space<vmem>>, vector<128x128xf32>
    %c0_3 = arith.constant 0 : index
    %c0_4 = arith.constant 0 : index
    %2 = vector.load %arg3[%c0_3, %c0_4] : memref<1x128xf32, #tpu.memory_space<vmem>>, vector<1x128xf32>
    %c0_5 = arith.constant 0 : index
    %c0_6 = arith.constant 0 : index
    %3 = vector.load %arg4[%c0_5, %c0_6] : memref<1x1xf32, #tpu.memory_space<vmem>>, vector<1x1xf32>
    %cst = arith.constant dense<0.000000e+00> : vector<64x128xf32>
    %4 = tpu.matmul %0, %1, %cst {dimension_numbers = #tpu.dot_dimension_numbers<[1], [0], [0], [1], [0, 0, 1, 1], [], []>} : vector<64x128xf32>, vector<128x128xf32>, vector<64x128xf32> -> vector<64x128xf32>
    %5 = arith.mulf %0, %0 : vector<64x128xf32>
    %cst_7 = arith.constant dense<0.000000e+00> : vector<64xf32>
    %6 = vector.multi_reduction <add>, %5, %cst_7 [1] : vector<64x128xf32> to vector<64xf32>
    %7 = vector.shape_cast %6 : vector<64xf32> to vector<64x1xf32>
    %8 = math.sqrt %7 : vector<64x1xf32>
    %cst_8 = arith.constant 1.000000e-15 : f32
    %9 = vector.broadcast %cst_8 : f32 to vector<64x1xf32>
    %10 = arith.maximumf %8, %9 : vector<64x1xf32>
    %11 = arith.mulf %4, %4 : vector<64x128xf32>
    %cst_9 = arith.constant dense<0.000000e+00> : vector<64xf32>
    %12 = vector.multi_reduction <add>, %11, %cst_9 [1] : vector<64x128xf32> to vector<64xf32>
    %13 = vector.shape_cast %12 : vector<64xf32> to vector<64x1xf32>
    %14 = math.sqrt %13 : vector<64x1xf32>
    %cst_10 = arith.constant 1.000000e-15 : f32
    %15 = vector.broadcast %cst_10 : f32 to vector<64x1xf32>
    %16 = arith.maximumf %14, %15 : vector<64x1xf32>
    %17 = tpu.reciprocal %10 : vector<64x1xf32> -> vector<64x1xf32>
    %18 = arith.mulf %16, %17 : vector<64x1xf32>
    %cst_11 = arith.constant 1.000000e+00 : f32
    %19 = vector.broadcast %cst_11 : f32 to vector<64x1xf32>
    %20 = arith.mulf %19, %10 : vector<64x1xf32>
    %cst_12 = arith.constant -0.99999988 : f32
    %cst_13 = arith.constant 0.99999988 : f32
    %21 = vector.broadcast %cst_12 : f32 to vector<64x1xf32>
    %22 = arith.maximumf %21, %20 : vector<64x1xf32>
    %23 = vector.broadcast %cst_13 : f32 to vector<64x1xf32>
    %24 = arith.minimumf %23, %22 : vector<64x1xf32>
    %cst_14 = arith.constant 1.000000e+00 : f32
    %25 = vector.broadcast %cst_14 : f32 to vector<64x1xf32>
    %26 = arith.addf %25, %24 : vector<64x1xf32>
    %cst_15 = arith.constant 1.000000e+00 : f32
    %27 = vector.broadcast %cst_15 : f32 to vector<64x1xf32>
    %28 = arith.subf %27, %24 : vector<64x1xf32>
    %29 = arith.divf %26, %28 : vector<64x1xf32>
    %30 = math.log %29 : vector<64x1xf32>
    %cst_16 = arith.constant 5.000000e-01 : f32
    %31 = vector.broadcast %cst_16 : f32 to vector<64x1xf32>
    %32 = arith.mulf %31, %30 : vector<64x1xf32>
    %33 = arith.mulf %18, %32 : vector<64x1xf32>
    %cst_17 = arith.constant -1.500000e+01 : f32
    %cst_18 = arith.constant 1.500000e+01 : f32
    %34 = vector.broadcast %cst_17 : f32 to vector<64x1xf32>
    %35 = arith.maximumf %34, %33 : vector<64x1xf32>
    %36 = vector.broadcast %cst_18 : f32 to vector<64x1xf32>
    %37 = arith.minimumf %36, %35 : vector<64x1xf32>
    %38 = math.tanh %37 : vector<64x1xf32>
    %cst_19 = arith.constant 1.000000e+00 : f32
    %39 = vector.broadcast %cst_19 : f32 to vector<64x1xf32>
    %40 = arith.mulf %39, %16 : vector<64x1xf32>
    %41 = tpu.reciprocal %40 : vector<64x1xf32> -> vector<64x1xf32>
    %42 = arith.mulf %38, %41 : vector<64x1xf32>
    %43 = vector.broadcast %42 : vector<64x1xf32> to vector<64x128xf32>
    %44 = arith.mulf %4, %43 : vector<64x128xf32>
    %cst_20 = arith.constant 0.000000e+00 : f32
    %45 = vector.broadcast %cst_20 : f32 to vector<64x1xf32>
    %46 = arith.cmpf oeq, %13, %45 : vector<64x1xf32>
    %cst_21 = arith.constant 0.000000e+00 : f32
    %47 = vector.shape_cast %46 : vector<64x1xi1> to vector<64x1xi1>
    %48 = vector.broadcast %47 : vector<64x1xi1> to vector<64x128xi1>
    %49 = vector.broadcast %cst_21 : f32 to vector<64x128xf32>
    %50 = arith.select %48, %49, %44 : vector<64x128xi1>, vector<64x128xf32>
    %51 = arith.mulf %50, %50 : vector<64x128xf32>
    %cst_22 = arith.constant dense<0.000000e+00> : vector<64xf32>
    %52 = vector.multi_reduction <add>, %51, %cst_22 [1] : vector<64x128xf32> to vector<64xf32>
    %53 = vector.shape_cast %52 : vector<64xf32> to vector<64x1xf32>
    %54 = math.sqrt %53 : vector<64x1xf32>
    %cst_23 = arith.constant 1.000000e-15 : f32
    %55 = vector.broadcast %cst_23 : f32 to vector<64x1xf32>
    %56 = arith.maximumf %54, %55 : vector<64x1xf32>
    %cst_24 = arith.constant 0.995999991 : f32
    %57 = vector.broadcast %cst_24 : f32 to vector<64x1xf32>
    %58 = arith.cmpf ogt, %56, %57 : vector<64x1xf32>
    %59 = tpu.reciprocal %56 : vector<64x1xf32> -> vector<64x1xf32>
    %cst_25 = arith.constant 0.995999991 : f32
    %60 = vector.broadcast %cst_25 : f32 to vector<64x1xf32>
    %61 = arith.mulf %60, %59 : vector<64x1xf32>
    %cst_26 = arith.constant 1.000000e+00 : f32
    %62 = vector.broadcast %cst_26 : f32 to vector<64x1xf32>
    %63 = arith.select %58, %61, %62 : vector<64x1xi1>, vector<64x1xf32>
    %64 = vector.broadcast %63 : vector<64x1xf32> to vector<64x128xf32>
    %65 = arith.mulf %50, %64 : vector<64x128xf32>
    %cst_27 = arith.constant 0.995999991 : f32
    %66 = vector.broadcast %cst_27 : f32 to vector<64x1xf32>
    %67 = arith.minimumf %56, %66 : vector<64x1xf32>
    %68 = arith.mulf %67, %67 : vector<64x1xf32>
    %69 = vector.broadcast %2 : vector<1x128xf32> to vector<64x128xf32>
    %70 = arith.mulf %65, %69 : vector<64x128xf32>
    %cst_28 = arith.constant dense<0.000000e+00> : vector<64xf32>
    %71 = vector.multi_reduction <add>, %70, %cst_28 [1] : vector<64x128xf32> to vector<64xf32>
    %72 = vector.shape_cast %71 : vector<64xf32> to vector<64x1xf32>
    %cst_29 = arith.constant 2.000000e+00 : f32
    %73 = vector.broadcast %cst_29 : f32 to vector<64x1xf32>
    %74 = arith.mulf %73, %72 : vector<64x1xf32>
    %cst_30 = arith.constant 1.000000e+00 : f32
    %75 = vector.broadcast %cst_30 : f32 to vector<64x1xf32>
    %76 = arith.addf %75, %74 : vector<64x1xf32>
    %cst_31 = arith.constant 1.000000e+00 : f32
    %77 = vector.broadcast %cst_31 : f32 to vector<1x1xf32>
    %78 = arith.mulf %77, %3 : vector<1x1xf32>
    %79 = vector.broadcast %78 : vector<1x1xf32> to vector<64x1xf32>
    %80 = arith.addf %76, %79 : vector<64x1xf32>
    %cst_32 = arith.constant 1.000000e+00 : f32
    %81 = vector.broadcast %cst_32 : f32 to vector<64x1xf32>
    %82 = arith.mulf %81, %68 : vector<64x1xf32>
    %cst_33 = arith.constant 1.000000e+00 : f32
    %83 = vector.broadcast %cst_33 : f32 to vector<64x1xf32>
    %84 = arith.subf %83, %82 : vector<64x1xf32>
    %cst_34 = arith.constant 2.000000e+00 : f32
    %85 = vector.broadcast %cst_34 : f32 to vector<64x1xf32>
    %86 = arith.mulf %85, %72 : vector<64x1xf32>
    %cst_35 = arith.constant 1.000000e+00 : f32
    %87 = vector.broadcast %cst_35 : f32 to vector<64x1xf32>
    %88 = arith.addf %87, %86 : vector<64x1xf32>
    %cst_36 = arith.constant 1.000000e+00 : f32
    %89 = vector.broadcast %cst_36 : f32 to vector<64x1xf32>
    %90 = arith.mulf %89, %68 : vector<64x1xf32>
    %91 = vector.broadcast %3 : vector<1x1xf32> to vector<64x1xf32>
    %92 = arith.mulf %90, %91 : vector<64x1xf32>
    %93 = arith.addf %88, %92 : vector<64x1xf32>
    %cst_37 = arith.constant 1.000000e-15 : f32
    %94 = vector.broadcast %cst_37 : f32 to vector<64x1xf32>
    %95 = arith.maximumf %93, %94 : vector<64x1xf32>
    %96 = vector.broadcast %80 : vector<64x1xf32> to vector<64x128xf32>
    %97 = arith.mulf %96, %65 : vector<64x128xf32>
    %98 = vector.broadcast %84 : vector<64x1xf32> to vector<64x128xf32>
    %99 = vector.broadcast %2 : vector<1x128xf32> to vector<64x128xf32>
    %100 = arith.mulf %98, %99 : vector<64x128xf32>
    %101 = arith.addf %97, %100 : vector<64x128xf32>
    %102 = tpu.reciprocal %95 : vector<64x1xf32> -> vector<64x1xf32>
    %103 = vector.broadcast %102 : vector<64x1xf32> to vector<64x128xf32>
    %104 = arith.mulf %101, %103 : vector<64x128xf32>
    %105 = arith.mulf %104, %104 : vector<64x128xf32>
    %cst_38 = arith.constant dense<0.000000e+00> : vector<64xf32>
    %106 = vector.multi_reduction <add>, %105, %cst_38 [1] : vector<64x128xf32> to vector<64xf32>
    %107 = vector.shape_cast %106 : vector<64xf32> to vector<64x1xf32>
    %108 = math.sqrt %107 : vector<64x1xf32>
    %cst_39 = arith.constant 1.000000e-15 : f32
    %109 = vector.broadcast %cst_39 : f32 to vector<64x1xf32>
    %110 = arith.maximumf %108, %109 : vector<64x1xf32>
    %cst_40 = arith.constant 0.995999991 : f32
    %111 = vector.broadcast %cst_40 : f32 to vector<64x1xf32>
    %112 = arith.cmpf ogt, %110, %111 : vector<64x1xf32>
    %113 = tpu.reciprocal %110 : vector<64x1xf32> -> vector<64x1xf32>
    %cst_41 = arith.constant 0.995999991 : f32
    %114 = vector.broadcast %cst_41 : f32 to vector<64x1xf32>
    %115 = arith.mulf %114, %113 : vector<64x1xf32>
    %cst_42 = arith.constant 1.000000e+00 : f32
    %116 = vector.broadcast %cst_42 : f32 to vector<64x1xf32>
    %117 = arith.select %112, %115, %116 : vector<64x1xi1>, vector<64x1xf32>
    %118 = vector.broadcast %117 : vector<64x1xf32> to vector<64x128xf32>
    %119 = arith.mulf %104, %118 : vector<64x128xf32>
    %c0_43 = arith.constant 0 : index
    %c0_44 = arith.constant 0 : index
    %120 = vector.load %arg5[%c0_43, %c0_44] : memref<64x128xf32, #tpu.memory_space<vmem>>, vector<64x128xf32>
    tpu.vector_store %arg5[%c0_43, %c0_44], %119 {strides = array<i32>} : memref<64x128xf32, #tpu.memory_space<vmem>>, vector<64x128xf32>,
    return
  }
  func.func @transform_0(%arg0: i32) -> (i32, i32) {
    %c0_i32 = arith.constant 0 : i32
    %c0_i32_0 = arith.constant 0 : i32
    return %arg0, %c0_i32 : i32, i32
  }
  func.func @transform_1(%arg0: i32) -> (i32, i32) {
    %c0_i32 = arith.constant 0 : i32
    %c0_i32_0 = arith.constant 0 : i32
    %c0_i32_1 = arith.constant 0 : i32
    return %c0_i32, %c0_i32_0 : i32, i32
  }
  func.func @transform_2(%arg0: i32) -> (i32, i32) {
    %c0_i32 = arith.constant 0 : i32
    %c0_i32_0 = arith.constant 0 : i32
    %c0_i32_1 = arith.constant 0 : i32
    return %c0_i32, %c0_i32_0 : i32, i32
  }
  func.func @transform_3(%arg0: i32) -> (i32, i32) {
    %c0_i32 = arith.constant 0 : i32
    %c0_i32_0 = arith.constant 0 : i32
    %c0_i32_1 = arith.constant 0 : i32
    return %c0_i32, %c0_i32_0 : i32, i32
  }
  func.func @transform_4(%arg0: i32) -> (i32, i32) {
    %c0_i32 = arith.constant 0 : i32
    %c0_i32_0 = arith.constant 0 : i32
    return %arg0, %c0_i32 : i32, i32
  }
}

module attributes {stable_mosaic.version = 11 : i64} {
  func.func @hyp_linear_kernel(%arg0: i32, %arg1: memref<64x128xf32, #tpu.memory_space<vmem>>, %arg2: memref<128x128xf32, #tpu.memory_space<vmem>>, %arg3: memref<1x128xf32, #tpu.memory_space<vmem>>, %arg4: memref<1x1xf32, #tpu.memory_space<vmem>>, %arg5: memref<64x128xf32, #tpu.memory_space<vmem>>) attributes {dimension_semantics = [#tpu.dimension_semantics<parallel>], iteration_bounds = array<i64: 1>, scalar_prefetch = 0 : i64, scratch_operands = 0 : i64, tpu.core_type = #tpu.core_type<tc>, window_params = [{transform_indices = @transform_0, window_bounds = array<i64: 64, 128>}, {pipeline_mode = #tpu.pipeline_mode<synchronous>, transform_indices = @transform_1, window_bounds = array<i64: 128, 128>}, {pipeline_mode = #tpu.pipeline_mode<synchronous>, transform_indices = @transform_2, window_bounds = array<i64: 1, 128>}, {pipeline_mode = #tpu.pipeline_mode<synchronous>, transform_indices = @transform_3, window_bounds = array<i64: 1, 1>}, {transform_indices = @transform_4, window_bounds = array<i64: 64, 128>}]} {
    %c0 = arith.constant 0 : index
    %c0_0 = arith.constant 0 : index
    %0 = vector.load %arg1[%c0, %c0_0] : memref<64x128xf32, #tpu.memory_space<vmem>>, vector<64x128xf32>
    %c0_1 = arith.constant 0 : index
    %c0_2 = arith.constant 0 : index
    %1 = vector.load %arg2[%c0_1, %c0_2] : memref<128x128xf32, #tpu.memory_space<vmem>>, vector<128x128xf32>
    %c0_3 = arith.constant 0 : index
    %c0_4 = arith.constant 0 : index
    %2 = vector.load %arg3[%c0_3, %c0_4] : memref<1x128xf32, #tpu.memory_space<vmem>>, vector<1x128xf32>
    %c0_5 = arith.constant 0 : index
    %c0_6 = arith.constant 0 : index
    %3 = vector.load %arg4[%c0_5, %c0_6] : memref<1x1xf32, #tpu.memory_space<vmem>>, vector<1x1xf32>
    %cst = arith.constant dense<0.000000e+00> : vector<64x128xf32>
    %4 = tpu.matmul %0, %1, %cst {dimension_numbers = #tpu.dot_dimension_numbers<[1], [0], [0], [1], [0, 0, 1, 1], [], []>} : vector<64x128xf32>, vector<128x128xf32>, vector<64x128xf32> -> vector<64x128xf32>
    %5 = arith.mulf %0, %0 : vector<64x128xf32>
    %cst_7 = arith.constant dense<0.000000e+00> : vector<64xf32>
    %6 = vector.multi_reduction <add>, %5, %cst_7 [1] : vector<64x128xf32> to vector<64xf32>
    %7 = vector.shape_cast %6 : vector<64xf32> to vector<64x1xf32>
    %8 = math.sqrt %7 : vector<64x1xf32>
    %cst_8 = arith.constant 1.000000e-15 : f32
    %9 = vector.broadcast %cst_8 : f32 to vector<64x1xf32>
    %10 = arith.maximumf %8, %9 : vector<64x1xf32>
    %11 = arith.mulf %4, %4 : vector<64x128xf32>
    %cst_9 = arith.constant dense<0.000000e+00> : vector<64xf32>
    %12 = vector.multi_reduction <add>, %11, %cst_9 [1] : vector<64x128xf32> to vector<64xf32>
    %13 = vector.shape_cast %12 : vector<64xf32> to vector<64x1xf32>
    %14 = math.sqrt %13 : vector<64x1xf32>
    %cst_10 = arith.constant 1.000000e-15 : f32
    %15 = vector.broadcast %cst_10 : f32 to vector<64x1xf32>
    %16 = arith.maximumf %14, %15 : vector<64x1xf32>
    %17 = tpu.reciprocal %10 : vector<64x1xf32> -> vector<64x1xf32>
    %18 = arith.mulf %16, %17 : vector<64x1xf32>
    %cst_11 = arith.constant 1.000000e+00 : f32
    %19 = vector.broadcast %cst_11 : f32 to vector<64x1xf32>
    %20 = arith.mulf %19, %10 : vector<64x1xf32>
    %cst_12 = arith.constant -0.99999988 : f32
    %cst_13 = arith.constant 0.99999988 : f32
    %21 = vector.broadcast %cst_12 : f32 to vector<64x1xf32>
    %22 = arith.maximumf %21, %20 : vector<64x1xf32>
    %23 = vector.broadcast %cst_13 : f32 to vector<64x1xf32>
    %24 = arith.minimumf %23, %22 : vector<64x1xf32>
    %cst_14 = arith.constant 1.000000e+00 : f32
    %25 = vector.broadcast %cst_14 : f32 to vector<64x1xf32>
    %26 = arith.addf %25, %24 : vector<64x1xf32>
    %cst_15 = arith.constant 1.000000e+00 : f32
    %27 = vector.broadcast %cst_15 : f32 to vector<64x1xf32>
    %28 = arith.subf %27, %24 : vector<64x1xf32>
    %29 = arith.divf %26, %28 : vector<64x1xf32>
    %30 = math.log %29 : vector<64x1xf32>
    %cst_16 = arith.constant 5.000000e-01 : f32
    %31 = vector.broadcast %cst_16 : f32 to vector<64x1xf32>
    %32 = arith.mulf %31, %30 : vector<64x1xf32>
    %33 = arith.mulf %18, %32 : vector<64x1xf32>
    %cst_17 = arith.constant -1.500000e+01 : f32
    %cst_18 = arith.constant 1.500000e+01 : f32
    %34 = vector.broadcast %cst_17 : f32 to vector<64x1xf32>
    %35 = arith.maximumf %34, %33 : vector<64x1xf32>
    %36 = vector.broadcast %cst_18 : f32 to vector<64x1xf32>
    %37 = arith.minimumf %36, %35 : vector<64x1xf32>
    %38 = math.tanh %37 : vector<64x1xf32>
    %cst_19 = arith.constant 1.000000e+00 : f32
    %39 = vector.broadcast %cst_19 : f32 to vector<64x1xf32>
    %40 = arith.mulf %39, %16 : vector<64x1xf32>
    %41 = tpu.reciprocal %40 : vector<64x1xf32> -> vector<64x1xf32>
    %42 = arith.mulf %38, %41 : vector<64x1xf32>
    %43 = vector.broadcast %42 : vector<64x1xf32> to vector<64x128xf32>
    %44 = arith.mulf %4, %43 : vector<64x128xf32>
    %cst_20 = arith.constant 0.000000e+00 : f32
    %45 = vector.broadcast %cst_20 : f32 to vector<64x1xf32>
    %46 = arith.cmpf oeq, %13, %45 : vector<64x1xf32>
    %cst_21 = arith.constant 0.000000e+00 : f32
    %47 = vector.shape_cast %46 : vector<64x1xi1> to vector<64x1xi1>
    %48 = vector.broadcast %47 : vector<64x1xi1> to vector<64x128xi1>
    %49 = vector.broadcast %cst_21 : f32 to vector<64x128xf32>
    %50 = arith.select %48, %49, %44 : vector<64x128xi1>, vector<64x128xf32>
    %51 = arith.mulf %50, %50 : vector<64x128xf32>
    %cst_22 = arith.constant dense<0.000000e+00> : vector<64xf32>
    %52 = vector.multi_reduction <add>, %51, %cst_22 [1] : vector<64x128xf32> to vector<64xf32>
    %53 = vector.shape_cast %52 : vector<64xf32> to vector<64x1xf32>
    %54 = math.sqrt %53 : vector<64x1xf32>
    %cst_23 = arith.constant 1.000000e-15 : f32
    %55 = vector.broadcast %cst_23 : f32 to vector<64x1xf32>
    %56 = arith.maximumf %54, %55 : vector<64x1xf32>
    %cst_24 = arith.constant 0.995999991 : f32
    %57 = vector.broadcast %cst_24 : f32 to vector<64x1xf32>
    %58 = arith.cmpf ogt, %56, %57 : vector<64x1xf32>
    %59 = tpu.reciprocal %56 : vector<64x1xf32> -> vector<64x1xf32>
    %cst_25 = arith.constant 0.995999991 : f32
    %60 = vector.broadcast %cst_25 : f32 to vector<64x1xf32>
    %61 = arith.mulf %60, %59 : vector<64x1xf32>
    %cst_26 = arith.constant 1.000000e+00 : f32
    %62 = vector.broadcast %cst_26 : f32 to vector<64x1xf32>
    %63 = arith.select %58, %61, %62 : vector<64x1xi1>, vector<64x1xf32>
    %64 = vector.broadcast %63 : vector<64x1xf32> to vector<64x128xf32>
    %65 = arith.mulf %50, %64 : vector<64x128xf32>
    %cst_27 = arith.constant 0.995999991 : f32
    %66 = vector.broadcast %cst_27 : f32 to vector<64x1xf32>
    %67 = arith.minimumf %56, %66 : vector<64x1xf32>
    %68 = arith.mulf %67, %67 : vector<64x1xf32>
    %69 = vector.broadcast %2 : vector<1x128xf32> to vector<64x128xf32>
    %70 = arith.mulf %65, %69 : vector<64x128xf32>
    %cst_28 = arith.constant dense<0.000000e+00> : vector<64xf32>
    %71 = vector.multi_reduction <add>, %70, %cst_28 [1] : vector<64x128xf32> to vector<64xf32>
    %72 = vector.shape_cast %71 : vector<64xf32> to vector<64x1xf32>
    %cst_29 = arith.constant 2.000000e+00 : f32
    %73 = vector.broadcast %cst_29 : f32 to vector<64x1xf32>
    %74 = arith.mulf %73, %72 : vector<64x1xf32>
    %cst_30 = arith.constant 1.000000e+00 : f32
    %75 = vector.broadcast %cst_30 : f32 to vector<64x1xf32>
    %76 = arith.addf %75, %74 : vector<64x1xf32>
    %cst_31 = arith.constant 1.000000e+00 : f32
    %77 = vector.broadcast %cst_31 : f32 to vector<1x1xf32>
    %78 = arith.mulf %77, %3 : vector<1x1xf32>
    %79 = vector.broadcast %78 : vector<1x1xf32> to vector<64x1xf32>
    %80 = arith.addf %76, %79 : vector<64x1xf32>
    %cst_32 = arith.constant 1.000000e+00 : f32
    %81 = vector.broadcast %cst_32 : f32 to vector<64x1xf32>
    %82 = arith.mulf %81, %68 : vector<64x1xf32>
    %cst_33 = arith.constant 1.000000e+00 : f32
    %83 = vector.broadcast %cst_33 : f32 to vector<64x1xf32>
    %84 = arith.subf %83, %82 : vector<64x1xf32>
    %cst_34 = arith.constant 2.000000e+00 : f32
    %85 = vector.broadcast %cst_34 : f32 to vector<64x1xf32>
    %86 = arith.mulf %85, %72 : vector<64x1xf32>
    %cst_35 = arith.constant 1.000000e+00 : f32
    %87 = vector.broadcast %cst_35 : f32 to vector<64x1xf32>
    %88 = arith.addf %87, %86 : vector<64x1xf32>
    %cst_36 = arith.constant 1.000000e+00 : f32
    %89 = vector.broadcast %cst_36 : f32 to vector<64x1xf32>
    %90 = arith.mulf %89, %68 : vector<64x1xf32>
    %91 = vector.broadcast %3 : vector<1x1xf32> to vector<64x1xf32>
    %92 = arith.mulf %90, %91 : vector<64x1xf32>
    %93 = arith.addf %88, %92 : vector<64x1xf32>
    %cst_37 = arith.constant 1.000000e-15 : f32
    %94 = vector.broadcast %cst_37 : f32 to vector<64x1xf32>
    %95 = arith.maximumf %93, %94 : vector<64x1xf32>
    %96 = vector.broadcast %80 : vector<64x1xf32> to vector<64x128xf32>
    %97 = arith.mulf %96, %65 : vector<64x128xf32>
    %98 = vector.broadcast %84 : vector<64x1xf32> to vector<64x128xf32>
    %99 = vector.broadcast %2 : vector<1x128xf32> to vector<64x128xf32>
    %100 = arith.mulf %98, %99 : vector<64x128xf32>
    %101 = arith.addf %97, %100 : vector<64x128xf32>
    %102 = tpu.reciprocal %95 : vector<64x1xf32> -> vector<64x1xf32>
    %103 = vector.broadcast %102 : vector<64x1xf32> to vector<64x128xf32>
    %104 = arith.mulf %101, %103 : vector<64x128xf32>
    %105 = arith.mulf %104, %104 : vector<64x128xf32>
    %cst_38 = arith.constant dense<0.000000e+00> : vector<64xf32>
    %106 = vector.multi_reduction <add>, %105, %cst_38 [1] : vector<64x128xf32> to vector<64xf32>
    %107 = vector.shape_cast %106 : vector<64xf32> to vector<64x1xf32>
    %108 = math.sqrt %107 : vector<64x1xf32>
    %cst_39 = arith.constant 1.000000e-15 : f32
    %109 = vector.broadcast %cst_39 : f32 to vector<64x1xf32>
    %110 = arith.maximumf %108, %109 : vector<64x1xf32>
    %cst_40 = arith.constant 0.995999991 : f32
    %111 = vector.broadcast %cst_40 : f32 to vector<64x1xf32>
    %112 = arith.cmpf ogt, %110, %111 : vector<64x1xf32>
    %113 = tpu.reciprocal %110 : vector<64x1xf32> -> vector<64x1xf32>
    %cst_41 = arith.constant 0.995999991 : f32
    %114 = vector.broadcast %cst_41 : f32 to vector<64x1xf32>
    %115 = arith.mulf %114, %113 : vector<64x1xf32>
    %cst_42 = arith.constant 1.000000e+00 : f32
    %116 = vector.broadcast %cst_42 : f32 to vector<64x1xf32>
    %117 = arith.select %112, %115, %116 : vector<64x1xi1>, vector<64x1xf32>
    %118 = vector.broadcast %117 : vector<64x1xf32> to vector<64x128xf32>
    %119 = arith.mulf %104, %118 : vector<64x128xf32>
    %c0_43 = arith.constant 0 : index
    %c0_44 = arith.constant 0 : index
    %120 = vector.load %arg5[%c0_43, %c0_44] : memref<64x128xf32, #tpu.memory_space<vmem>>, vector<64x128xf32>
    tpu.vector_store %arg5[%c0_43, %c0_44], %119 {strides = array<i32>} : memref<64x128xf32, #tpu.memory_space<vmem>>, vector<64x128xf32>,
    return
  }
  func.func @transform_0(%arg0: i32) -> (i32, i32) {
    %c0_i32 = arith.constant 0 : i32
    %c0_i32_0 = arith.constant 0 : i32
    return %arg0, %c0_i32 : i32, i32
  }
  func.func @transform_1(%arg0: i32) -> (i32, i32) {
    %c0_i32 = arith.constant 0 : i32
    %c0_i32_0 = arith.constant 0 : i32
    %c0_i32_1 = arith.constant 0 : i32
    return %c0_i32, %c0_i32_0 : i32, i32
  }
  func.func @transform_2(%arg0: i32) -> (i32, i32) {
    %c0_i32 = arith.constant 0 : i32
    %c0_i32_0 = arith.constant 0 : i32
    %c0_i32_1 = arith.constant 0 : i32
    return %c0_i32, %c0_i32_0 : i32, i32
  }
  func.func @transform_3(%arg0: i32) -> (i32, i32) {
    %c0_i32 = arith.constant 0 : i32
    %c0_i32_0 = arith.constant 0 : i32
    %c0_i32_1 = arith.constant 0 : i32
    return %c0_i32, %c0_i32_0 : i32, i32
  }
  func.func @transform_4(%arg0: i32) -> (i32, i32) {
    %c0_i32 = arith.constant 0 : i32
    %c0_i32_0 = arith.constant 0 : i32
    return %arg0, %c0_i32 : i32, i32
  }
}

</mosaic_0001>

<llo_original>
// kernel: tpu_custom_call.1
$region0: #{tpu_custom_call.1}
  #allocation0 [shape = 'u32[]', space=smem, size = 0x4, offset = 0x4, fixed_abs, tag = 'smem constant byte address 0x4 - core index']
  #allocation1 [shape = 'u32[144,128]{1,0:T(1,128)}', space=vmem, size = 0x12000, scoped, tag = 'internal scratch']
  #allocation2 [shape = 'f32[1,1]{1,0:T(1,128)S(1)}', space=vmem, size = 0x200, scoped, tag = 'scoped memory for tpu_custom_call.1']
  %s0 = inlined_call_operand.hbm [shape: f32[64,128], index: 0, kind: input, shape index: {}]
  %s1 = inlined_call_operand.hbm [shape: f32[128,128], index: 1, kind: input, shape index: {}]
  %s2 = inlined_call_operand.vmem [shape: f32[1,128], index: 2, kind: input, shape index: {}]
  %s3 = inlined_call_operand.<no memory space> [shape: f32[1,1], index: 3, kind: input, shape index: {}]
  %s4 = inlined_call_operand.hbm [shape: f32[64,128], index: 4, kind: output, shape index: {}]
  %s5 = sld [smem:[#allocation0]]
  $region34: #{tpu_custom_call.1} parent=0
    _
  %s7 = ssub.s32 1, %s5
  %s8 = scalar_select 0, %s7, %s5
  %v9 = vstv %s3
  %10 = vst [vmem:[#allocation2] sm:$0x1] %v9
  $region1: #{tpu_custom_call.1} parent=0
    #allocation3 [shape = 'u8[32768]{0}', space=vmem, size = 0x8000, scoped, tag = 'input window, operand 0, single buffered']
    #allocation4 [shape = 's32[1]{0}', space=sflag, size = 0x4, scoped, tag = 'scoped memory for tpu_custom_call.1']
    #allocation5 [shape = 's32[1]{0}', space=sflag, size = 0x4, scoped, tag = 'scoped memory for tpu_custom_call.1']
    #allocation6 [shape = 'u8[65536]{0}', space=vmem, size = 0x10000, scoped, tag = 'input window, operand 1, single buffered']
    #allocation7 [shape = 's32[1]{0}', space=sflag, size = 0x4, scoped, tag = 'scoped memory for tpu_custom_call.1']
    #allocation8 [shape = 'u8[32768]{0}', space=vmem, size = 0x8000, scoped, tag = 'output window, operand 0, single buffered']
    %11 = vsyncpa [#allocation4], 0
    %12 = vsyncpa [#allocation7], 0
    %13 = vsyncpa [#allocation5], 0
    // Predicated region
    $region2: #{tpu_custom_call.1} parent=1 // pred_check
      _
    $region3: #{tpu_custom_call.1} parent=1 // pred_check_branch
      %15 = sbr.rel (0) target = $region5
    $region4: #{tpu_custom_call.1} parent=1 // pred_region
      %s17 = ssub.s32 1024, 1024
      %18 = vsyncadd [#allocation4], %s17
      %s19 = sshll.u32 [#allocation3], 4
      %s20 = int_to_ptr.vmem [resolvable:$true] %s19
      %25 = dma.hbm_to_vmem [thread:$0]  %s0, 1024, %s20, [#allocation4], 128, 128, 8
    $region5: #{tpu_custom_call.1} parent=1 // pred_fallthru
      _
    // Predicated region
    $region6: #{tpu_custom_call.1} parent=1 // pred_check
      _
    $region7: #{tpu_custom_call.1} parent=1 // pred_check_branch
      %27 = sbr.rel (0) target = $region9
    $region8: #{tpu_custom_call.1} parent=1 // pred_region
      %s29 = ssub.s32 2048, 2048
      %30 = vsyncadd [#allocation7], %s29
      %s31 = sshll.u32 [#allocation6], 4
      %s32 = int_to_ptr.vmem [resolvable:$true] %s31
      %37 = dma.hbm_to_vmem [thread:$0]  %s1, 2048, %s32, [#allocation7], 128, 128, 8
    $region9: #{tpu_custom_call.1} parent=1 // pred_fallthru
      _
    // Predicated region
    $region10: #{tpu_custom_call.1} parent=1 // pred_check
      _
    $region11: #{tpu_custom_call.1} parent=1 // pred_check_branch
      %39 = sbr.rel (0) target = $region13
    $region12: #{tpu_custom_call.1} parent=1 // pred_region
      _
    $region13: #{tpu_custom_call.1} parent=1 // pred_fallthru
      _
    // Predicated region
    $region14: #{tpu_custom_call.1} parent=1 // pred_check
      _
    $region15: #{tpu_custom_call.1} parent=1 // pred_check_branch
      %41 = sbr.rel (0) target = $region17
    $region16: #{tpu_custom_call.1} parent=1 // pred_region
      _
    $region17: #{tpu_custom_call.1} parent=1 // pred_fallthru
      _
    // Predicated region
    $region18: #{tpu_custom_call.1} parent=1 // pred_check
      _
    $region19: #{tpu_custom_call.1} parent=1 // pred_check_branch
      %43 = sbr.rel (0) target = $region21
    $region20: #{tpu_custom_call.1} parent=1 // pred_region
      %44 = dma.done [#allocation4], 1024
    $region21: #{tpu_custom_call.1} parent=1 // pred_fallthru
      _
    // Predicated region
    $region22: #{tpu_custom_call.1} parent=1 // pred_check
      _
    $region23: #{tpu_custom_call.1} parent=1 // pred_check_branch
      %46 = sbr.rel (0) target = $region25
    $region24: #{tpu_custom_call.1} parent=1 // pred_region
      %47 = dma.done [#allocation7], 2048
    $region25: #{tpu_custom_call.1} parent=1 // pred_fallthru
      _
    %v48 = vld [vmem:[#allocation3] sm:$0xff]
    %v49 = vld [vmem:[#allocation3 + $0x8] sm:$0xff]
    %v50 = vld [vmem:[#allocation3 + $0x10] sm:$0xff]
    %v51 = vld [vmem:[#allocation3 + $0x18] sm:$0xff]
    %v52 = vld [vmem:[#allocation3 + $0x20] sm:$0xff]
    %v53 = vld [vmem:[#allocation3 + $0x28] sm:$0xff]
    %v54 = vld [vmem:[#allocation3 + $0x30] sm:$0xff]
    %v55 = vld [vmem:[#allocation3 + $0x38] sm:$0xff]
    %v56 = vld [vmem:[#allocation6] sm:$0xff]
    %v57 = vld [vmem:[#allocation6 + $0x8] sm:$0xff]
    %v58 = vld [vmem:[#allocation6 + $0x10] sm:$0xff]
    %v59 = vld [vmem:[#allocation6 + $0x18] sm:$0xff]
    %v60 = vld [vmem:[#allocation6 + $0x20] sm:$0xff]
    %v61 = vld [vmem:[#allocation6 + $0x28] sm:$0xff]
    %v62 = vld [vmem:[#allocation6 + $0x30] sm:$0xff]
    %v63 = vld [vmem:[#allocation6 + $0x38] sm:$0xff]
    %v64 = vld [vmem:[#allocation6 + $0x40] sm:$0xff]
    %v65 = vld [vmem:[#allocation6 + $0x48] sm:$0xff]
    %v66 = vld [vmem:[#allocation6 + $0x50] sm:$0xff]
    %v67 = vld [vmem:[#allocation6 + $0x58] sm:$0xff]
    %v68 = vld [vmem:[#allocation6 + $0x60] sm:$0xff]
    %v69 = vld [vmem:[#allocation6 + $0x68] sm:$0xff]
    %v70 = vld [vmem:[#allocation6 + $0x70] sm:$0xff]
    %v71 = vld [vmem:[#allocation6 + $0x78] sm:$0xff]
    %v72 = vld [vmem:[%s2] sm:$0x1]
    %v73 = vld [vmem:[#allocation2] sm:$0x1]
    %74 = vmatprep.subr.mxu0 0.0
    %75 = vmatpush1.msra.mxu0 %v56
    %76 = vmatprep.subr.mxu0 0.0
    %77 = vmatpush1.msra.mxu0 %v57
    %78 = vmatprep.subr.mxu0 0.0
    %79 = vmatpush1.msra.mxu0 %v58
    %80 = vmatprep.subr.mxu0 0.0
    %81 = vmatpush1.msra.mxu0 %v59
    %82 = vmatprep.subr.mxu0 0.0
    %83 = vmatpush1.msra.mxu0 %v60
    %84 = vmatprep.subr.mxu0 0.0
    %85 = vmatpush1.msra.mxu0 %v61
    %86 = vmatprep.subr.mxu0 0.0
    %87 = vmatpush1.msra.mxu0 %v62
    %88 = vmatprep.subr.mxu0 0.0
    %89 = vmatpush1.msra.mxu0 %v63
    %90 = vmatprep.subr.mxu0 0.0
    %91 = vmatpush1.msra.mxu0 %v64
    %92 = vmatprep.subr.mxu0 0.0
    %93 = vmatpush1.msra.mxu0 %v65
    %94 = vmatprep.subr.mxu0 0.0
    %95 = vmatpush1.msra.mxu0 %v66
    %96 = vmatprep.subr.mxu0 0.0
    %97 = vmatpush1.msra.mxu0 %v67
    %98 = vmatprep.subr.mxu0 0.0
    %99 = vmatpush1.msra.mxu0 %v68
    %100 = vmatprep.subr.mxu0 0.0
    %101 = vmatpush1.msra.mxu0 %v69
    %102 = vmatprep.subr.mxu0 0.0
    %103 = vmatpush1.msra.mxu0 %v70
    %104 = vmatprep.subr.mxu0 0.0
    %105 = vmatpush1.msra.mxu0 %v71
    %106 = vmatprep.subr.mxu0 0.0
    %107 = vmatpush1.msra.mxu0 0.0
    %108 = vmatprep.subr.mxu0 0.0
    %109 = vmatpush1.msra.mxu0 0.0
    %110 = vmatprep.subr.mxu0 0.0
    %111 = vmatpush1.msra.mxu0 0.0
    %112 = vmatprep.subr.mxu0 0.0
    %113 = vmatpush1.msra.mxu0 0.0
    %114 = vmatprep.subr.mxu0 0.0
    %115 = vmatpush1.msra.mxu0 0.0
    %116 = vmatprep.subr.mxu0 0.0
    %117 = vmatpush1.msra.mxu0 0.0
    %118 = vmatprep.subr.mxu0 0.0
    %119 = vmatpush1.msra.mxu0 0.0
    %120 = vmatprep.subr.mxu0 0.0
    %121 = vmatpush1.msra.mxu0 0.0
    %122 = vmatprep.subr.mxu0 0.0
    %123 = vmatpush1.msra.mxu0 0.0
    %124 = vmatprep.subr.mxu0 0.0
    %125 = vmatpush1.msra.mxu0 0.0
    %126 = vmatprep.subr.mxu0 0.0
    %127 = vmatpush1.msra.mxu0 0.0
    %128 = vmatprep.subr.mxu0 0.0
    %129 = vmatpush1.msra.mxu0 0.0
    %130 = vmatprep.subr.mxu0 0.0
    %131 = vmatpush1.msra.mxu0 0.0
    %132 = vmatprep.subr.mxu0 0.0
    %133 = vmatpush1.msra.mxu0 0.0
    %134 = vmatprep.subr.mxu0 0.0
    %135 = vmatpush1.msra.mxu0 0.0
    %136 = vmatprep.subr.mxu0 0.0
    %137 = vmatpush1.msra.mxu0 0.0
    %138 = vmatprep.mubr.f32.mxu0 0.0
    %139 = vmatmul.mubr.f32.gmra.mrb[0].mxu0 %v48
    %v140 = vpop.f32.mrb[0].mxu0
    %v141 = vadd.f32 0.0, %v140
    %v142 = vpop.f32.mrb[0].mxu0
    %143 = vmatprep.mubr.f32.mxu0 0.0
    %144 = vmatmul.mubr.f32.gmra.mrb[0].mxu0 %v49
    %v145 = vpop.f32.mrb[0].mxu0
    %v146 = vadd.f32 0.0, %v145
    %v147 = vpop.f32.mrb[0].mxu0
    %148 = vmatprep.mubr.f32.mxu0 0.0
    %149 = vmatmul.mubr.f32.gmra.mrb[0].mxu0 %v50
    %v150 = vpop.f32.mrb[0].mxu0
    %v151 = vadd.f32 0.0, %v150
    %v152 = vpop.f32.mrb[0].mxu0
    %153 = vmatprep.mubr.f32.mxu0 0.0
    %154 = vmatmul.mubr.f32.gmra.mrb[0].mxu0 %v51
    %v155 = vpop.f32.mrb[0].mxu0
    %v156 = vadd.f32 0.0, %v155
    %v157 = vpop.f32.mrb[0].mxu0
    %158 = vmatprep.mubr.f32.mxu0 0.0
    %159 = vmatmul.mubr.f32.gmra.mrb[0].mxu0 %v52
    %v160 = vpop.f32.mrb[0].mxu0
    %v161 = vadd.f32 0.0, %v160
    %v162 = vpop.f32.mrb[0].mxu0
    %163 = vmatprep.mubr.f32.mxu0 0.0
    %164 = vmatmul.mubr.f32.gmra.mrb[0].mxu0 %v53
    %v165 = vpop.f32.mrb[0].mxu0
    %v166 = vadd.f32 0.0, %v165
    %v167 = vpop.f32.mrb[0].mxu0
    %168 = vmatprep.mubr.f32.mxu0 0.0
    %169 = vmatmul.mubr.f32.gmra.mrb[0].mxu0 %v54
    %v170 = vpop.f32.mrb[0].mxu0
    %v171 = vadd.f32 0.0, %v170
    %v172 = vpop.f32.mrb[0].mxu0
    %173 = vmatprep.mubr.f32.mxu0 0.0
    %174 = vmatmul.mubr.f32.gmra.mrb[0].mxu0 %v55
    %v175 = vpop.f32.mrb[0].mxu0
    %v176 = vadd.f32 0.0, %v175
    %v177 = vpop.f32.mrb[0].mxu0
    %178 = vdwg.mxu0
    %v179 = vmul.f32 %v48, %v48
    %v180 = vmul.f32 %v49, %v49
    %v181 = vmul.f32 %v50, %v50
    %v182 = vmul.f32 %v51, %v51
    %v183 = vmul.f32 %v52, %v52
    %v184 = vmul.f32 %v53, %v53
    %v185 = vmul.f32 %v54, %v54
    %v186 = vmul.f32 %v55, %v55
    %187 = vadd.xlane.f32.xlu0 %v179
    %v188 = vpop.xlane.xlu0 %187
    %189 = vadd.xlane.f32.xlu0 %v180
    %v190 = vpop.xlane.xlu0 %189
    %191 = vadd.xlane.f32.xlu0 %v181
    %v192 = vpop.xlane.xlu0 %191
    %193 = vadd.xlane.f32.xlu0 %v182
    %v194 = vpop.xlane.xlu0 %193
    %195 = vadd.xlane.f32.xlu0 %v183
    %v196 = vpop.xlane.xlu0 %195
    %197 = vadd.xlane.f32.xlu0 %v184
    %v198 = vpop.xlane.xlu0 %197
    %199 = vadd.xlane.f32.xlu0 %v185
    %v200 = vpop.xlane.xlu0 %199
    %201 = vadd.xlane.f32.xlu0 %v186
    %v202 = vpop.xlane.xlu0 %201
    %v203 = vrsqrt.pop %v188
    %v204 = vmul.f32 %v188, %v203
    %vm205 = vcmp.eq.f32.partialorder %v188, inf
    %v206 = vsel %vm205, %v188, %v204
    %vm207 = vcmp.eq.f32.partialorder %v188, 0.0
    %v208 = vand.u32 %v188, 2147483648
    %v209 = vsel %vm207, %v208, %v206
    %v210 = vrsqrt.pop %v190
    %v211 = vmul.f32 %v190, %v210
    %vm212 = vcmp.eq.f32.partialorder %v190, inf
    %v213 = vsel %vm212, %v190, %v211
    %vm214 = vcmp.eq.f32.partialorder %v190, 0.0
    %v215 = vand.u32 %v190, 2147483648
    %v216 = vsel %vm214, %v215, %v213
    %v217 = vrsqrt.pop %v192
    %v218 = vmul.f32 %v192, %v217
    %vm219 = vcmp.eq.f32.partialorder %v192, inf
    %v220 = vsel %vm219, %v192, %v218
    %vm221 = vcmp.eq.f32.partialorder %v192, 0.0
    %v222 = vand.u32 %v192, 2147483648
    %v223 = vsel %vm221, %v222, %v220
    %v224 = vrsqrt.pop %v194
    %v225 = vmul.f32 %v194, %v224
    %vm226 = vcmp.eq.f32.partialorder %v194, inf
    %v227 = vsel %vm226, %v194, %v225
    %vm228 = vcmp.eq.f32.partialorder %v194, 0.0
    %v229 = vand.u32 %v194, 2147483648
    %v230 = vsel %vm228, %v229, %v227
    %v231 = vrsqrt.pop %v196
    %v232 = vmul.f32 %v196, %v231
    %vm233 = vcmp.eq.f32.partialorder %v196, inf
    %v234 = vsel %vm233, %v196, %v232
    %vm235 = vcmp.eq.f32.partialorder %v196, 0.0
    %v236 = vand.u32 %v196, 2147483648
    %v237 = vsel %vm235, %v236, %v234
    %v238 = vrsqrt.pop %v198
    %v239 = vmul.f32 %v198, %v238
    %vm240 = vcmp.eq.f32.partialorder %v198, inf
    %v241 = vsel %vm240, %v198, %v239
    %vm242 = vcmp.eq.f32.partialorder %v198, 0.0
    %v243 = vand.u32 %v198, 2147483648
    %v244 = vsel %vm242, %v243, %v241
    %v245 = vrsqrt.pop %v200
    %v246 = vmul.f32 %v200, %v245
    %vm247 = vcmp.eq.f32.partialorder %v200, inf
    %v248 = vsel %vm247, %v200, %v246
    %vm249 = vcmp.eq.f32.partialorder %v200, 0.0
    %v250 = vand.u32 %v200, 2147483648
    %v251 = vsel %vm249, %v250, %v248
    %v252 = vrsqrt.pop %v202
    %v253 = vmul.f32 %v202, %v252
    %vm254 = vcmp.eq.f32.partialorder %v202, inf
    %v255 = vsel %vm254, %v202, %v253
    %vm256 = vcmp.eq.f32.partialorder %v202, 0.0
    %v257 = vand.u32 %v202, 2147483648
    %v258 = vsel %vm256, %v257, %v255
    %v259 = vmax.f32 %v209, 1e-15
    %v260 = vmax.f32 %v216, 1e-15
    %v261 = vmax.f32 %v223, 1e-15
    %v262 = vmax.f32 %v230, 1e-15
    %v263 = vmax.f32 %v237, 1e-15
    %v264 = vmax.f32 %v244, 1e-15
    %v265 = vmax.f32 %v251, 1e-15
    %v266 = vmax.f32 %v258, 1e-15
    %v267 = vmul.f32 %v141, %v141
    %v268 = vmul.f32 %v146, %v146
    %v269 = vmul.f32 %v151, %v151
    %v270 = vmul.f32 %v156, %v156
    %v271 = vmul.f32 %v161, %v161
    %v272 = vmul.f32 %v166, %v166
    %v273 = vmul.f32 %v171, %v171
    %v274 = vmul.f32 %v176, %v176
    %275 = vadd.xlane.f32.xlu0 %v267
    %v276 = vpop.xlane.xlu0 %275
    %277 = vadd.xlane.f32.xlu0 %v268
    %v278 = vpop.xlane.xlu0 %277
    %279 = vadd.xlane.f32.xlu0 %v269
    %v280 = vpop.xlane.xlu0 %279
    %281 = vadd.xlane.f32.xlu0 %v270
    %v282 = vpop.xlane.xlu0 %281
    %283 = vadd.xlane.f32.xlu0 %v271
    %v284 = vpop.xlane.xlu0 %283
    %285 = vadd.xlane.f32.xlu0 %v272
    %v286 = vpop.xlane.xlu0 %285
    %287 = vadd.xlane.f32.xlu0 %v273
    %v288 = vpop.xlane.xlu0 %287
    %289 = vadd.xlane.f32.xlu0 %v274
    %v290 = vpop.xlane.xlu0 %289
    %v291 = vrsqrt.pop %v276
    %v292 = vmul.f32 %v276, %v291
    %vm293 = vcmp.eq.f32.partialorder %v276, inf
    %v294 = vsel %vm293, %v276, %v292
    %vm295 = vcmp.eq.f32.partialorder %v276, 0.0
    %v296 = vand.u32 %v276, 2147483648
    %v297 = vsel %vm295, %v296, %v294
    %v298 = vrsqrt.pop %v278
    %v299 = vmul.f32 %v278, %v298
    %vm300 = vcmp.eq.f32.partialorder %v278, inf
    %v301 = vsel %vm300, %v278, %v299
    %vm302 = vcmp.eq.f32.partialorder %v278, 0.0
    %v303 = vand.u32 %v278, 2147483648
    %v304 = vsel %vm302, %v303, %v301
    %v305 = vrsqrt.pop %v280
    %v306 = vmul.f32 %v280, %v305
    %vm307 = vcmp.eq.f32.partialorder %v280, inf
    %v308 = vsel %vm307, %v280, %v306
    %vm309 = vcmp.eq.f32.partialorder %v280, 0.0
    %v310 = vand.u32 %v280, 2147483648
    %v311 = vsel %vm309, %v310, %v308
    %v312 = vrsqrt.pop %v282
    %v313 = vmul.f32 %v282, %v312
    %vm314 = vcmp.eq.f32.partialorder %v282, inf
    %v315 = vsel %vm314, %v282, %v313
    %vm316 = vcmp.eq.f32.partialorder %v282, 0.0
    %v317 = vand.u32 %v282, 2147483648
    %v318 = vsel %vm316, %v317, %v315
    %v319 = vrsqrt.pop %v284
    %v320 = vmul.f32 %v284, %v319
    %vm321 = vcmp.eq.f32.partialorder %v284, inf
    %v322 = vsel %vm321, %v284, %v320
    %vm323 = vcmp.eq.f32.partialorder %v284, 0.0
    %v324 = vand.u32 %v284, 2147483648
    %v325 = vsel %vm323, %v324, %v322
    %v326 = vrsqrt.pop %v286
    %v327 = vmul.f32 %v286, %v326
    %vm328 = vcmp.eq.f32.partialorder %v286, inf
    %v329 = vsel %vm328, %v286, %v327
    %vm330 = vcmp.eq.f32.partialorder %v286, 0.0
    %v331 = vand.u32 %v286, 2147483648
    %v332 = vsel %vm330, %v331, %v329
    %v333 = vrsqrt.pop %v288
    %v334 = vmul.f32 %v288, %v333
    %vm335 = vcmp.eq.f32.partialorder %v288, inf
    %v336 = vsel %vm335, %v288, %v334
    %vm337 = vcmp.eq.f32.partialorder %v288, 0.0
    %v338 = vand.u32 %v288, 2147483648
    %v339 = vsel %vm337, %v338, %v336
    %v340 = vrsqrt.pop %v290
    %v341 = vmul.f32 %v290, %v340
    %vm342 = vcmp.eq.f32.partialorder %v290, inf
    %v343 = vsel %vm342, %v290, %v341
    %vm344 = vcmp.eq.f32.partialorder %v290, 0.0
    %v345 = vand.u32 %v290, 2147483648
    %v346 = vsel %vm344, %v345, %v343
    %v347 = vmax.f32 %v297, 1e-15
    %v348 = vmax.f32 %v304, 1e-15
    %v349 = vmax.f32 %v311, 1e-15
    %v350 = vmax.f32 %v318, 1e-15
    %v351 = vmax.f32 %v325, 1e-15
    %v352 = vmax.f32 %v332, 1e-15
    %v353 = vmax.f32 %v339, 1e-15
    %v354 = vmax.f32 %v346, 1e-15
    %v355 = vrcp.pop %v259
    %v356 = vrcp.pop %v260
    %v357 = vrcp.pop %v261
    %v358 = vrcp.pop %v262
    %v359 = vrcp.pop %v263
    %v360 = vrcp.pop %v264
    %v361 = vrcp.pop %v265
    %v362 = vrcp.pop %v266
    %v363 = vmul.f32 %v347, %v355
    %v364 = vmul.f32 %v348, %v356
    %v365 = vmul.f32 %v349, %v357
    %v366 = vmul.f32 %v350, %v358
    %v367 = vmul.f32 %v351, %v359
    %v368 = vmul.f32 %v352, %v360
    %v369 = vmul.f32 %v353, %v361
    %v370 = vmul.f32 %v354, %v362
    %v371 = vmax.f32 %v259, -0.9999999
    %v372 = vmax.f32 %v260, -0.9999999
    %v373 = vmax.f32 %v261, -0.9999999
    %v374 = vmax.f32 %v262, -0.9999999
    %v375 = vmax.f32 %v263, -0.9999999
    %v376 = vmax.f32 %v264, -0.9999999
    %v377 = vmax.f32 %v265, -0.9999999
    %v378 = vmax.f32 %v266, -0.9999999
    %v379 = vmin.f32 %v371, 0.9999999
    %v380 = vmin.f32 %v372, 0.9999999
    %v381 = vmin.f32 %v373, 0.9999999
    %v382 = vmin.f32 %v374, 0.9999999
    %v383 = vmin.f32 %v375, 0.9999999
    %v384 = vmin.f32 %v376, 0.9999999
    %v385 = vmin.f32 %v377, 0.9999999
    %v386 = vmin.f32 %v378, 0.9999999
    %v387 = vadd.f32 %v379, 1.0
    %v388 = vadd.f32 %v380, 1.0
    %v389 = vadd.f32 %v381, 1.0
    %v390 = vadd.f32 %v382, 1.0
    %v391 = vadd.f32 %v383, 1.0
    %v392 = vadd.f32 %v384, 1.0
    %v393 = vadd.f32 %v385, 1.0
    %v394 = vadd.f32 %v386, 1.0
    %v395 = vsub.f32 1.0, %v379
    %v396 = vsub.f32 1.0, %v380
    %v397 = vsub.f32 1.0, %v381
    %v398 = vsub.f32 1.0, %v382
    %v399 = vsub.f32 1.0, %v383
    %v400 = vsub.f32 1.0, %v384
    %v401 = vsub.f32 1.0, %v385
    %v402 = vsub.f32 1.0, %v386
    %v403 = vrcp.pop %v395
    %v404 = vmul.f32 %v387, %v403
    %v405 = vrcp.pop %v396
    %v406 = vmul.f32 %v388, %v405
    %v407 = vrcp.pop %v397
    %v408 = vmul.f32 %v389, %v407
    %v409 = vrcp.pop %v398
    %v410 = vmul.f32 %v390, %v409
    %v411 = vrcp.pop %v399
    %v412 = vmul.f32 %v391, %v411
    %v413 = vrcp.pop %v400
    %v414 = vmul.f32 %v392, %v413
    %v415 = vrcp.pop %v401
    %v416 = vmul.f32 %v393, %v415
    %v417 = vrcp.pop %v402
    %v418 = vmul.f32 %v394, %v417
    %v419 = vlog2.pop %v404
    %v420 = vmul.f32 %v419, 0.6931472
    %v421 = vlog2.pop %v406
    %v422 = vmul.f32 %v421, 0.6931472
    %v423 = vlog2.pop %v408
    %v424 = vmul.f32 %v423, 0.6931472
    %v425 = vlog2.pop %v410
    %v426 = vmul.f32 %v425, 0.6931472
    %v427 = vlog2.pop %v412
    %v428 = vmul.f32 %v427, 0.6931472
    %v429 = vlog2.pop %v414
    %v430 = vmul.f32 %v429, 0.6931472
    %v431 = vlog2.pop %v416
    %v432 = vmul.f32 %v431, 0.6931472
    %v433 = vlog2.pop %v418
    %v434 = vmul.f32 %v433, 0.6931472
    %v435 = vmul.f32 %v420, 0.5
    %v436 = vmul.f32 %v422, 0.5
    %v437 = vmul.f32 %v424, 0.5
    %v438 = vmul.f32 %v426, 0.5
    %v439 = vmul.f32 %v428, 0.5
    %v440 = vmul.f32 %v430, 0.5
    %v441 = vmul.f32 %v432, 0.5
    %v442 = vmul.f32 %v434, 0.5
    %v443 = vmul.f32 %v363, %v435
    %v444 = vmul.f32 %v364, %v436
    %v445 = vmul.f32 %v365, %v437
    %v446 = vmul.f32 %v366, %v438
    %v447 = vmul.f32 %v367, %v439
    %v448 = vmul.f32 %v368, %v440
    %v449 = vmul.f32 %v369, %v441
    %v450 = vmul.f32 %v370, %v442
    %v451 = vmax.f32 %v443, -15.0
    %v452 = vmax.f32 %v444, -15.0
    %v453 = vmax.f32 %v445, -15.0
    %v454 = vmax.f32 %v446, -15.0
    %v455 = vmax.f32 %v447, -15.0
    %v456 = vmax.f32 %v448, -15.0
    %v457 = vmax.f32 %v449, -15.0
    %v458 = vmax.f32 %v450, -15.0
    %v459 = vmin.f32 %v451, 15.0
    %v460 = vmin.f32 %v452, 15.0
    %v461 = vmin.f32 %v453, 15.0
    %v462 = vmin.f32 %v454, 15.0
    %v463 = vmin.f32 %v455, 15.0
    %v464 = vmin.f32 %v456, 15.0
    %v465 = vmin.f32 %v457, 15.0
    %v466 = vmin.f32 %v458, 15.0
    %v467 = vtanh.pop %v459
    %v468 = vtanh.pop %v460
    %v469 = vtanh.pop %v461
    %v470 = vtanh.pop %v462
    %v471 = vtanh.pop %v463
    %v472 = vtanh.pop %v464
    %v473 = vtanh.pop %v465
    %v474 = vtanh.pop %v466
    %v475 = vrcp.pop %v347
    %v476 = vrcp.pop %v348
    %v477 = vrcp.pop %v349
    %v478 = vrcp.pop %v350
    %v479 = vrcp.pop %v351
    %v480 = vrcp.pop %v352
    %v481 = vrcp.pop %v353
    %v482 = vrcp.pop %v354
    %v483 = vmul.f32 %v467, %v475
    %v484 = vmul.f32 %v468, %v476
    %v485 = vmul.f32 %v469, %v477
    %v486 = vmul.f32 %v470, %v478
    %v487 = vmul.f32 %v471, %v479
    %v488 = vmul.f32 %v472, %v480
    %v489 = vmul.f32 %v473, %v481
    %v490 = vmul.f32 %v474, %v482
    %v491 = vmul.f32 %v141, %v483
    %v492 = vmul.f32 %v146, %v484
    %v493 = vmul.f32 %v151, %v485
    %v494 = vmul.f32 %v156, %v486
    %v495 = vmul.f32 %v161, %v487
    %v496 = vmul.f32 %v166, %v488
    %v497 = vmul.f32 %v171, %v489
    %v498 = vmul.f32 %v176, %v490
    %vm499 = vcmp.eq.f32.partialorder %v276, 0.0
    %vm500 = vcmp.eq.f32.partialorder %v278, 0.0
    %vm501 = vcmp.eq.f32.partialorder %v280, 0.0
    %vm502 = vcmp.eq.f32.partialorder %v282, 0.0
    %vm503 = vcmp.eq.f32.partialorder %v284, 0.0
    %vm504 = vcmp.eq.f32.partialorder %v286, 0.0
    %vm505 = vcmp.eq.f32.partialorder %v288, 0.0
    %vm506 = vcmp.eq.f32.partialorder %v290, 0.0
    %v507 = vsel %vm499, 1, 0
    %v508 = vsel %vm500, 1, 0
    %v509 = vsel %vm501, 1, 0
    %v510 = vsel %vm502, 1, 0
    %v511 = vsel %vm503, 1, 0
    %v512 = vsel %vm504, 1, 0
    %v513 = vsel %vm505, 1, 0
    %v514 = vsel %vm506, 1, 0
    %vm515 = vcmp.eq.s32.totalorder %v507, 1
    %vm516 = vcmp.eq.s32.totalorder %v508, 1
    %vm517 = vcmp.eq.s32.totalorder %v509, 1
    %vm518 = vcmp.eq.s32.totalorder %v510, 1
    %vm519 = vcmp.eq.s32.totalorder %v511, 1
    %vm520 = vcmp.eq.s32.totalorder %v512, 1
    %vm521 = vcmp.eq.s32.totalorder %v513, 1
    %vm522 = vcmp.eq.s32.totalorder %v514, 1
    %v523 = vsel %vm515, 0.0, %v491
    %v524 = vsel %vm516, 0.0, %v492
    %v525 = vsel %vm517, 0.0, %v493
    %v526 = vsel %vm518, 0.0, %v494
    %v527 = vsel %vm519, 0.0, %v495
    %v528 = vsel %vm520, 0.0, %v496
    %v529 = vsel %vm521, 0.0, %v497
    %v530 = vsel %vm522, 0.0, %v498
    %v531 = vmul.f32 %v523, %v523
    %v532 = vmul.f32 %v524, %v524
    %v533 = vmul.f32 %v525, %v525
    %v534 = vmul.f32 %v526, %v526
    %v535 = vmul.f32 %v527, %v527
    %v536 = vmul.f32 %v528, %v528
    %v537 = vmul.f32 %v529, %v529
    %v538 = vmul.f32 %v530, %v530
    %539 = vadd.xlane.f32.xlu0 %v531
    %v540 = vpop.xlane.xlu0 %539
    %541 = vadd.xlane.f32.xlu0 %v532
    %v542 = vpop.xlane.xlu0 %541
    %543 = vadd.xlane.f32.xlu0 %v533
    %v544 = vpop.xlane.xlu0 %543
    %545 = vadd.xlane.f32.xlu0 %v534
    %v546 = vpop.xlane.xlu0 %545
    %547 = vadd.xlane.f32.xlu0 %v535
    %v548 = vpop.xlane.xlu0 %547
    %549 = vadd.xlane.f32.xlu0 %v536
    %v550 = vpop.xlane.xlu0 %549
    %551 = vadd.xlane.f32.xlu0 %v537
    %v552 = vpop.xlane.xlu0 %551
    %553 = vadd.xlane.f32.xlu0 %v538
    %v554 = vpop.xlane.xlu0 %553
    %v555 = vrsqrt.pop %v540
    %v556 = vmul.f32 %v540, %v555
    %vm557 = vcmp.eq.f32.partialorder %v540, inf
    %v558 = vsel %vm557, %v540, %v556
    %vm559 = vcmp.eq.f32.partialorder %v540, 0.0
    %v560 = vand.u32 %v540, 2147483648
    %v561 = vsel %vm559, %v560, %v558
    %v562 = vrsqrt.pop %v542
    %v563 = vmul.f32 %v542, %v562
    %vm564 = vcmp.eq.f32.partialorder %v542, inf
    %v565 = vsel %vm564, %v542, %v563
    %vm566 = vcmp.eq.f32.partialorder %v542, 0.0
    %v567 = vand.u32 %v542, 2147483648
    %v568 = vsel %vm566, %v567, %v565
    %v569 = vrsqrt.pop %v544
    %v570 = vmul.f32 %v544, %v569
    %vm571 = vcmp.eq.f32.partialorder %v544, inf
    %v572 = vsel %vm571, %v544, %v570
    %vm573 = vcmp.eq.f32.partialorder %v544, 0.0
    %v574 = vand.u32 %v544, 2147483648
    %v575 = vsel %vm573, %v574, %v572
    %v576 = vrsqrt.pop %v546
    %v577 = vmul.f32 %v546, %v576
    %vm578 = vcmp.eq.f32.partialorder %v546, inf
    %v579 = vsel %vm578, %v546, %v577
    %vm580 = vcmp.eq.f32.partialorder %v546, 0.0
    %v581 = vand.u32 %v546, 2147483648
    %v582 = vsel %vm580, %v581, %v579
    %v583 = vrsqrt.pop %v548
    %v584 = vmul.f32 %v548, %v583
    %vm585 = vcmp.eq.f32.partialorder %v548, inf
    %v586 = vsel %vm585, %v548, %v584
    %vm587 = vcmp.eq.f32.partialorder %v548, 0.0
    %v588 = vand.u32 %v548, 2147483648
    %v589 = vsel %vm587, %v588, %v586
    %v590 = vrsqrt.pop %v550
    %v591 = vmul.f32 %v550, %v590
    %vm592 = vcmp.eq.f32.partialorder %v550, inf
    %v593 = vsel %vm592, %v550, %v591
    %vm594 = vcmp.eq.f32.partialorder %v550, 0.0
    %v595 = vand.u32 %v550, 2147483648
    %v596 = vsel %vm594, %v595, %v593
    %v597 = vrsqrt.pop %v552
    %v598 = vmul.f32 %v552, %v597
    %vm599 = vcmp.eq.f32.partialorder %v552, inf
    %v600 = vsel %vm599, %v552, %v598
    %vm601 = vcmp.eq.f32.partialorder %v552, 0.0
    %v602 = vand.u32 %v552, 2147483648
    %v603 = vsel %vm601, %v602, %v600
    %v604 = vrsqrt.pop %v554
    %v605 = vmul.f32 %v554, %v604
    %vm606 = vcmp.eq.f32.partialorder %v554, inf
    %v607 = vsel %vm606, %v554, %v605
    %vm608 = vcmp.eq.f32.partialorder %v554, 0.0
    %v609 = vand.u32 %v554, 2147483648
    %v610 = vsel %vm608, %v609, %v607
    %v611 = vmax.f32 %v561, 1e-15
    %v612 = vmax.f32 %v568, 1e-15
    %v613 = vmax.f32 %v575, 1e-15
    %v614 = vmax.f32 %v582, 1e-15
    %v615 = vmax.f32 %v589, 1e-15
    %v616 = vmax.f32 %v596, 1e-15
    %v617 = vmax.f32 %v603, 1e-15
    %v618 = vmax.f32 %v610, 1e-15
    %vm619 = vcmp.gt.f32.partialorder %v611, 0.996
    %vm620 = vcmp.gt.f32.partialorder %v612, 0.996
    %vm621 = vcmp.gt.f32.partialorder %v613, 0.996
    %vm622 = vcmp.gt.f32.partialorder %v614, 0.996
    %vm623 = vcmp.gt.f32.partialorder %v615, 0.996
    %vm624 = vcmp.gt.f32.partialorder %v616, 0.996
    %vm625 = vcmp.gt.f32.partialorder %v617, 0.996
    %vm626 = vcmp.gt.f32.partialorder %v618, 0.996
    %v627 = vrcp.pop %v611
    %v628 = vrcp.pop %v612
    %v629 = vrcp.pop %v613
    %v630 = vrcp.pop %v614
    %v631 = vrcp.pop %v615
    %v632 = vrcp.pop %v616
    %v633 = vrcp.pop %v617
    %v634 = vrcp.pop %v618
    %v635 = vmul.f32 %v627, 0.996
    %v636 = vmul.f32 %v628, 0.996
    %v637 = vmul.f32 %v629, 0.996
    %v638 = vmul.f32 %v630, 0.996
    %v639 = vmul.f32 %v631, 0.996
    %v640 = vmul.f32 %v632, 0.996
    %v641 = vmul.f32 %v633, 0.996
    %v642 = vmul.f32 %v634, 0.996
    %v643 = vsel %vm619, %v635, 1.0
    %v644 = vsel %vm620, %v636, 1.0
    %v645 = vsel %vm621, %v637, 1.0
    %v646 = vsel %vm622, %v638, 1.0
    %v647 = vsel %vm623, %v639, 1.0
    %v648 = vsel %vm624, %v640, 1.0
    %v649 = vsel %vm625, %v641, 1.0
    %v650 = vsel %vm626, %v642, 1.0
    %v651 = vmul.f32 %v523, %v643
    %v652 = vmul.f32 %v524, %v644
    %v653 = vmul.f32 %v525, %v645
    %v654 = vmul.f32 %v526, %v646
    %v655 = vmul.f32 %v527, %v647
    %v656 = vmul.f32 %v528, %v648
    %v657 = vmul.f32 %v529, %v649
    %v658 = vmul.f32 %v530, %v650
    %v659 = vmin.f32 %v611, 0.996
    %v660 = vmin.f32 %v612, 0.996
    %v661 = vmin.f32 %v613, 0.996
    %v662 = vmin.f32 %v614, 0.996
    %v663 = vmin.f32 %v615, 0.996
    %v664 = vmin.f32 %v616, 0.996
    %v665 = vmin.f32 %v617, 0.996
    %v666 = vmin.f32 %v618, 0.996
    %v667 = vmul.f32 %v659, %v659
    %v668 = vmul.f32 %v660, %v660
    %v669 = vmul.f32 %v661, %v661
    %v670 = vmul.f32 %v662, %v662
    %v671 = vmul.f32 %v663, %v663
    %v672 = vmul.f32 %v664, %v664
    %v673 = vmul.f32 %v665, %v665
    %v674 = vmul.f32 %v666, %v666
    %v676 = vlaneseq
    %v677 = vshrl.u32 %v676, 7
    %v678 = vsub.s32 0, %v677
    %v679 = vrot.slane %v72, %v678
    %v681 = vmul.f32 %v651, %v679
    %v682 = vmul.f32 %v652, %v679
    %v683 = vmul.f32 %v653, %v679
    %v684 = vmul.f32 %v654, %v679
    %v685 = vmul.f32 %v655, %v679
    %v686 = vmul.f32 %v656, %v679
    %v687 = vmul.f32 %v657, %v679
    %v688 = vmul.f32 %v658, %v679
    %689 = vadd.xlane.f32.xlu0 %v681
    %v690 = vpop.xlane.xlu0 %689
    %691 = vadd.xlane.f32.xlu0 %v682
    %v692 = vpop.xlane.xlu0 %691
    %693 = vadd.xlane.f32.xlu0 %v683
    %v694 = vpop.xlane.xlu0 %693
    %695 = vadd.xlane.f32.xlu0 %v684
    %v696 = vpop.xlane.xlu0 %695
    %697 = vadd.xlane.f32.xlu0 %v685
    %v698 = vpop.xlane.xlu0 %697
    %699 = vadd.xlane.f32.xlu0 %v686
    %v700 = vpop.xlane.xlu0 %699
    %701 = vadd.xlane.f32.xlu0 %v687
    %v702 = vpop.xlane.xlu0 %701
    %703 = vadd.xlane.f32.xlu0 %v688
    %v704 = vpop.xlane.xlu0 %703
    %v705 = vmul.f32 %v690, 2.0
    %v706 = vmul.f32 %v692, 2.0
    %v707 = vmul.f32 %v694, 2.0
    %v708 = vmul.f32 %v696, 2.0
    %v709 = vmul.f32 %v698, 2.0
    %v710 = vmul.f32 %v700, 2.0
    %v711 = vmul.f32 %v702, 2.0
    %v712 = vmul.f32 %v704, 2.0
    %v713 = vadd.f32 %v705, 1.0
    %v714 = vadd.f32 %v706, 1.0
    %v715 = vadd.f32 %v707, 1.0
    %v716 = vadd.f32 %v708, 1.0
    %v717 = vadd.f32 %v709, 1.0
    %v718 = vadd.f32 %v710, 1.0
    %v719 = vadd.f32 %v711, 1.0
    %v720 = vadd.f32 %v712, 1.0
    %v722 = vlaneseq
    %v723 = vshrl.u32 %v722, 7
    %v724 = vsub.s32 0, %v723
    %v725 = vrot.slane %v73, %v724
    %v727 = vadd.f32 %v713, %v725
    %v728 = vadd.f32 %v714, %v725
    %v729 = vadd.f32 %v715, %v725
    %v730 = vadd.f32 %v716, %v725
    %v731 = vadd.f32 %v717, %v725
    %v732 = vadd.f32 %v718, %v725
    %v733 = vadd.f32 %v719, %v725
    %v734 = vadd.f32 %v720, %v725
    %v735 = vsub.f32 1.0, %v667
    %v736 = vsub.f32 1.0, %v668
    %v737 = vsub.f32 1.0, %v669
    %v738 = vsub.f32 1.0, %v670
    %v739 = vsub.f32 1.0, %v671
    %v740 = vsub.f32 1.0, %v672
    %v741 = vsub.f32 1.0, %v673
    %v742 = vsub.f32 1.0, %v674
    %v743 = vmul.f32 %v667, %v725
    %v744 = vmul.f32 %v668, %v725
    %v745 = vmul.f32 %v669, %v725
    %v746 = vmul.f32 %v670, %v725
    %v747 = vmul.f32 %v671, %v725
    %v748 = vmul.f32 %v672, %v725
    %v749 = vmul.f32 %v673, %v725
    %v750 = vmul.f32 %v674, %v725
    %v751 = vadd.f32 %v713, %v743
    %v752 = vadd.f32 %v714, %v744
    %v753 = vadd.f32 %v715, %v745
    %v754 = vadd.f32 %v716, %v746
    %v755 = vadd.f32 %v717, %v747
    %v756 = vadd.f32 %v718, %v748
    %v757 = vadd.f32 %v719, %v749
    %v758 = vadd.f32 %v720, %v750
    %v759 = vmax.f32 %v751, 1e-15
    %v760 = vmax.f32 %v752, 1e-15
    %v761 = vmax.f32 %v753, 1e-15
    %v762 = vmax.f32 %v754, 1e-15
    %v763 = vmax.f32 %v755, 1e-15
    %v764 = vmax.f32 %v756, 1e-15
    %v765 = vmax.f32 %v757, 1e-15
    %v766 = vmax.f32 %v758, 1e-15
    %768 = vset.pattern.permute.xlu0 0
    %769 = vperm.xlu0 %768, %v727
    %v770 = vpop.permute.xlu0 %769
    %773 = vset.pattern.permute.xlu0 0
    %774 = vperm.xlu0 %773, %v728
    %v775 = vpop.permute.xlu0 %774
    %778 = vset.pattern.permute.xlu0 0
    %779 = vperm.xlu0 %778, %v729
    %v780 = vpop.permute.xlu0 %779
    %783 = vset.pattern.permute.xlu0 0
    %784 = vperm.xlu0 %783, %v730
    %v785 = vpop.permute.xlu0 %784
    %788 = vset.pattern.permute.xlu0 0
    %789 = vperm.xlu0 %788, %v731
    %v790 = vpop.permute.xlu0 %789
    %793 = vset.pattern.permute.xlu0 0
    %794 = vperm.xlu0 %793, %v732
    %v795 = vpop.permute.xlu0 %794
    %798 = vset.pattern.permute.xlu0 0
    %799 = vperm.xlu0 %798, %v733
    %v800 = vpop.permute.xlu0 %799
    %803 = vset.pattern.permute.xlu0 0
    %804 = vperm.xlu0 %803, %v734
    %v805 = vpop.permute.xlu0 %804
    %v807 = vmul.f32 %v770, %v651
    %v808 = vmul.f32 %v775, %v652
    %v809 = vmul.f32 %v780, %v653
    %v810 = vmul.f32 %v785, %v654
    %v811 = vmul.f32 %v790, %v655
    %v812 = vmul.f32 %v795, %v656
    %v813 = vmul.f32 %v800, %v657
    %v814 = vmul.f32 %v805, %v658
    %v815 = vmul.f32 %v735, %v679
    %v816 = vmul.f32 %v736, %v679
    %v817 = vmul.f32 %v737, %v679
    %v818 = vmul.f32 %v738, %v679
    %v819 = vmul.f32 %v739, %v679
    %v820 = vmul.f32 %v740, %v679
    %v821 = vmul.f32 %v741, %v679
    %v822 = vmul.f32 %v742, %v679
    %v823 = vadd.f32 %v807, %v815
    %v824 = vadd.f32 %v808, %v816
    %v825 = vadd.f32 %v809, %v817
    %v826 = vadd.f32 %v810, %v818
    %v827 = vadd.f32 %v811, %v819
    %v828 = vadd.f32 %v812, %v820
    %v829 = vadd.f32 %v813, %v821
    %v830 = vadd.f32 %v814, %v822
    %v831 = vrcp.pop %v759
    %v832 = vrcp.pop %v760
    %v833 = vrcp.pop %v761
    %v834 = vrcp.pop %v762
    %v835 = vrcp.pop %v763
    %v836 = vrcp.pop %v764
    %v837 = vrcp.pop %v765
    %v838 = vrcp.pop %v766
    %840 = vset.pattern.permute.xlu0 0
    %841 = vperm.xlu0 %840, %v831
    %v842 = vpop.permute.xlu0 %841
    %845 = vset.pattern.permute.xlu0 0
    %846 = vperm.xlu0 %845, %v832
    %v847 = vpop.permute.xlu0 %846
    %850 = vset.pattern.permute.xlu0 0
    %851 = vperm.xlu0 %850, %v833
    %v852 = vpop.permute.xlu0 %851
    %855 = vset.pattern.permute.xlu0 0
    %856 = vperm.xlu0 %855, %v834
    %v857 = vpop.permute.xlu0 %856
    %860 = vset.pattern.permute.xlu0 0
    %861 = vperm.xlu0 %860, %v835
    %v862 = vpop.permute.xlu0 %861
    %865 = vset.pattern.permute.xlu0 0
    %866 = vperm.xlu0 %865, %v836
    %v867 = vpop.permute.xlu0 %866
    %870 = vset.pattern.permute.xlu0 0
    %871 = vperm.xlu0 %870, %v837
    %v872 = vpop.permute.xlu0 %871
    %875 = vset.pattern.permute.xlu0 0
    %876 = vperm.xlu0 %875, %v838
    %v877 = vpop.permute.xlu0 %876
    %v879 = vmul.f32 %v823, %v842
    %v880 = vmul.f32 %v824, %v847
    %v881 = vmul.f32 %v825, %v852
    %v882 = vmul.f32 %v826, %v857
    %v883 = vmul.f32 %v827, %v862
    %v884 = vmul.f32 %v828, %v867
    %v885 = vmul.f32 %v829, %v872
    %v886 = vmul.f32 %v830, %v877
    %v887 = vmul.f32 %v879, %v879
    %v888 = vmul.f32 %v880, %v880
    %v889 = vmul.f32 %v881, %v881
    %v890 = vmul.f32 %v882, %v882
    %v891 = vmul.f32 %v883, %v883
    %v892 = vmul.f32 %v884, %v884
    %v893 = vmul.f32 %v885, %v885
    %v894 = vmul.f32 %v886, %v886
    %895 = vadd.xlane.f32.xlu0 %v887
    %v896 = vpop.xlane.xlu0 %895
    %897 = vadd.xlane.f32.xlu0 %v888
    %v898 = vpop.xlane.xlu0 %897
    %899 = vadd.xlane.f32.xlu0 %v889
    %v900 = vpop.xlane.xlu0 %899
    %901 = vadd.xlane.f32.xlu0 %v890
    %v902 = vpop.xlane.xlu0 %901
    %903 = vadd.xlane.f32.xlu0 %v891
    %v904 = vpop.xlane.xlu0 %903
    %905 = vadd.xlane.f32.xlu0 %v892
    %v906 = vpop.xlane.xlu0 %905
    %907 = vadd.xlane.f32.xlu0 %v893
    %v908 = vpop.xlane.xlu0 %907
    %909 = vadd.xlane.f32.xlu0 %v894
    %v910 = vpop.xlane.xlu0 %909
    %v911 = vrsqrt.pop %v896
    %v912 = vmul.f32 %v896, %v911
    %vm913 = vcmp.eq.f32.partialorder %v896, inf
    %v914 = vsel %vm913, %v896, %v912
    %vm915 = vcmp.eq.f32.partialorder %v896, 0.0
    %v916 = vand.u32 %v896, 2147483648
    %v917 = vsel %vm915, %v916, %v914
    %v918 = vrsqrt.pop %v898
    %v919 = vmul.f32 %v898, %v918
    %vm920 = vcmp.eq.f32.partialorder %v898, inf
    %v921 = vsel %vm920, %v898, %v919
    %vm922 = vcmp.eq.f32.partialorder %v898, 0.0
    %v923 = vand.u32 %v898, 2147483648
    %v924 = vsel %vm922, %v923, %v921
    %v925 = vrsqrt.pop %v900
    %v926 = vmul.f32 %v900, %v925
    %vm927 = vcmp.eq.f32.partialorder %v900, inf
    %v928 = vsel %vm927, %v900, %v926
    %vm929 = vcmp.eq.f32.partialorder %v900, 0.0
    %v930 = vand.u32 %v900, 2147483648
    %v931 = vsel %vm929, %v930, %v928
    %v932 = vrsqrt.pop %v902
    %v933 = vmul.f32 %v902, %v932
    %vm934 = vcmp.eq.f32.partialorder %v902, inf
    %v935 = vsel %vm934, %v902, %v933
    %vm936 = vcmp.eq.f32.partialorder %v902, 0.0
    %v937 = vand.u32 %v902, 2147483648
    %v938 = vsel %vm936, %v937, %v935
    %v939 = vrsqrt.pop %v904
    %v940 = vmul.f32 %v904, %v939
    %vm941 = vcmp.eq.f32.partialorder %v904, inf
    %v942 = vsel %vm941, %v904, %v940
    %vm943 = vcmp.eq.f32.partialorder %v904, 0.0
    %v944 = vand.u32 %v904, 2147483648
    %v945 = vsel %vm943, %v944, %v942
    %v946 = vrsqrt.pop %v906
    %v947 = vmul.f32 %v906, %v946
    %vm948 = vcmp.eq.f32.partialorder %v906, inf
    %v949 = vsel %vm948, %v906, %v947
    %vm950 = vcmp.eq.f32.partialorder %v906, 0.0
    %v951 = vand.u32 %v906, 2147483648
    %v952 = vsel %vm950, %v951, %v949
    %v953 = vrsqrt.pop %v908
    %v954 = vmul.f32 %v908, %v953
    %vm955 = vcmp.eq.f32.partialorder %v908, inf
    %v956 = vsel %vm955, %v908, %v954
    %vm957 = vcmp.eq.f32.partialorder %v908, 0.0
    %v958 = vand.u32 %v908, 2147483648
    %v959 = vsel %vm957, %v958, %v956
    %v960 = vrsqrt.pop %v910
    %v961 = vmul.f32 %v910, %v960
    %vm962 = vcmp.eq.f32.partialorder %v910, inf
    %v963 = vsel %vm962, %v910, %v961
    %vm964 = vcmp.eq.f32.partialorder %v910, 0.0
    %v965 = vand.u32 %v910, 2147483648
    %v966 = vsel %vm964, %v965, %v963
    %v967 = vmax.f32 %v917, 1e-15
    %v968 = vmax.f32 %v924, 1e-15
    %v969 = vmax.f32 %v931, 1e-15
    %v970 = vmax.f32 %v938, 1e-15
    %v971 = vmax.f32 %v945, 1e-15
    %v972 = vmax.f32 %v952, 1e-15
    %v973 = vmax.f32 %v959, 1e-15
    %v974 = vmax.f32 %v966, 1e-15
    %vm975 = vcmp.gt.f32.partialorder %v967, 0.996
    %vm976 = vcmp.gt.f32.partialorder %v968, 0.996
    %vm977 = vcmp.gt.f32.partialorder %v969, 0.996
    %vm978 = vcmp.gt.f32.partialorder %v970, 0.996
    %vm979 = vcmp.gt.f32.partialorder %v971, 0.996
    %vm980 = vcmp.gt.f32.partialorder %v972, 0.996
    %vm981 = vcmp.gt.f32.partialorder %v973, 0.996
    %vm982 = vcmp.gt.f32.partialorder %v974, 0.996
    %v983 = vrcp.pop %v967
    %v984 = vrcp.pop %v968
    %v985 = vrcp.pop %v969
    %v986 = vrcp.pop %v970
    %v987 = vrcp.pop %v971
    %v988 = vrcp.pop %v972
    %v989 = vrcp.pop %v973
    %v990 = vrcp.pop %v974
    %v991 = vmul.f32 %v983, 0.996
    %v992 = vmul.f32 %v984, 0.996
    %v993 = vmul.f32 %v985, 0.996
    %v994 = vmul.f32 %v986, 0.996
    %v995 = vmul.f32 %v987, 0.996
    %v996 = vmul.f32 %v988, 0.996
    %v997 = vmul.f32 %v989, 0.996
    %v998 = vmul.f32 %v990, 0.996
    %v999 = vsel %vm975, %v991, 1.0
    %v1000 = vsel %vm976, %v992, 1.0
    %v1001 = vsel %vm977, %v993, 1.0
    %v1002 = vsel %vm978, %v994, 1.0
    %v1003 = vsel %vm979, %v995, 1.0
    %v1004 = vsel %vm980, %v996, 1.0
    %v1005 = vsel %vm981, %v997, 1.0
    %v1006 = vsel %vm982, %v998, 1.0
    %v1007 = vmul.f32 %v879, %v999
    %v1008 = vmul.f32 %v880, %v1000
    %v1009 = vmul.f32 %v881, %v1001
    %v1010 = vmul.f32 %v882, %v1002
    %v1011 = vmul.f32 %v883, %v1003
    %v1012 = vmul.f32 %v884, %v1004
    %v1013 = vmul.f32 %v885, %v1005
    %v1014 = vmul.f32 %v886, %v1006
    %1015 = vst [vmem:[#allocation8] sm:$0xff] %v1007
    %1016 = vst [vmem:[#allocation8 + $0x8] sm:$0xff] %v1008
    %1017 = vst [vmem:[#allocation8 + $0x10] sm:$0xff] %v1009
    %1018 = vst [vmem:[#allocation8 + $0x18] sm:$0xff] %v1010
    %1019 = vst [vmem:[#allocation8 + $0x20] sm:$0xff] %v1011
    %1020 = vst [vmem:[#allocation8 + $0x28] sm:$0xff] %v1012
    %1021 = vst [vmem:[#allocation8 + $0x30] sm:$0xff] %v1013
    %1022 = vst [vmem:[#allocation8 + $0x38] sm:$0xff] %v1014
    // Predicated region
    $region26: #{tpu_custom_call.1} parent=1 // pred_check
      _
    $region27: #{tpu_custom_call.1} parent=1 // pred_check_branch
      %1024 = sbr.rel (0) target = $region29
    $region28: #{tpu_custom_call.1} parent=1 // pred_region
      %s1026 = ssub.s32 1024, 1024
      %1027 = vsyncadd [#allocation5], %s1026
      %s1028 = sshll.u32 [#allocation8], 4
      %s1029 = int_to_ptr.vmem [resolvable:$true] %s1028
      %1034 = dma.vmem_to_hbm [thread:$0]  %s1029, 1024, %s4, [#allocation5], 128, 128, 8
    $region29: #{tpu_custom_call.1} parent=1 // pred_fallthru
      _
    // Predicated region
    $region30: #{tpu_custom_call.1} parent=1 // pred_check
      _
    $region31: #{tpu_custom_call.1} parent=1 // pred_check_branch
      %1036 = sbr.rel (0) target = $region33
    $region32: #{tpu_custom_call.1} parent=1 // pred_region
      %1037 = dma.done [#allocation5], 1024
    $region33: #{tpu_custom_call.1} parent=1 // pred_fallthru
      _
    %1038 = vsyncpa [#allocation4], 1
    %1039 = vsyncpa [#allocation7], 1
    %1040 = vsyncpa [#allocation5], 1

// kernel: tpu_custom_call.1
$region0: #{tpu_custom_call.1}
  #allocation0 [shape = 'u32[]', space=smem, size = 0x4, offset = 0x4, fixed_abs, tag = 'smem constant byte address 0x4 - core index']
  #allocation1 [shape = 'u32[144,128]{1,0:T(1,128)}', space=vmem, size = 0x12000, scoped, tag = 'internal scratch']
  #allocation2 [shape = 'f32[1,1]{1,0:T(1,128)S(1)}', space=vmem, size = 0x200, scoped, tag = 'scoped memory for tpu_custom_call.1']
  %s0 = inlined_call_operand.hbm [shape: f32[64,128], index: 0, kind: input, shape index: {}]
  %s1 = inlined_call_operand.hbm [shape: f32[128,128], index: 1, kind: input, shape index: {}]
  %s2 = inlined_call_operand.vmem [shape: f32[1,128], index: 2, kind: input, shape index: {}]
  %s3 = inlined_call_operand.<no memory space> [shape: f32[1,1], index: 3, kind: input, shape index: {}]
  %s4 = inlined_call_operand.hbm [shape: f32[64,128], index: 4, kind: output, shape index: {}]
  %s5 = sld [smem:[#allocation0]]
  $region34: #{tpu_custom_call.1} parent=0
    _
  %s7 = ssub.s32 1, %s5
  %s8 = scalar_select 0, %s7, %s5
  %v9 = vstv %s3
  %10 = vst [vmem:[#allocation2] sm:$0x1] %v9
  $region1: #{tpu_custom_call.1} parent=0
    #allocation3 [shape = 'u8[32768]{0}', space=vmem, size = 0x8000, scoped, tag = 'input window, operand 0, single buffered']
    #allocation4 [shape = 's32[1]{0}', space=sflag, size = 0x4, scoped, tag = 'scoped memory for tpu_custom_call.1']
    #allocation5 [shape = 's32[1]{0}', space=sflag, size = 0x4, scoped, tag = 'scoped memory for tpu_custom_call.1']
    #allocation6 [shape = 'u8[65536]{0}', space=vmem, size = 0x10000, scoped, tag = 'input window, operand 1, single buffered']
    #allocation7 [shape = 's32[1]{0}', space=sflag, size = 0x4, scoped, tag = 'scoped memory for tpu_custom_call.1']
    #allocation8 [shape = 'u8[32768]{0}', space=vmem, size = 0x8000, scoped, tag = 'output window, operand 0, single buffered']
    %11 = vsyncpa [#allocation4], 0
    %12 = vsyncpa [#allocation7], 0
    %13 = vsyncpa [#allocation5], 0
    // Predicated region
    $region2: #{tpu_custom_call.1} parent=1 // pred_check
      _
    $region3: #{tpu_custom_call.1} parent=1 // pred_check_branch
      %15 = sbr.rel (0) target = $region5
    $region4: #{tpu_custom_call.1} parent=1 // pred_region
      %s17 = ssub.s32 1024, 1024
      %18 = vsyncadd [#allocation4], %s17
      %s19 = sshll.u32 [#allocation3], 4
      %s20 = int_to_ptr.vmem [resolvable:$true] %s19
      %25 = dma.hbm_to_vmem [thread:$0]  %s0, 1024, %s20, [#allocation4], 128, 128, 8
    $region5: #{tpu_custom_call.1} parent=1 // pred_fallthru
      _
    // Predicated region
    $region6: #{tpu_custom_call.1} parent=1 // pred_check
      _
    $region7: #{tpu_custom_call.1} parent=1 // pred_check_branch
      %27 = sbr.rel (0) target = $region9
    $region8: #{tpu_custom_call.1} parent=1 // pred_region
      %s29 = ssub.s32 2048, 2048
      %30 = vsyncadd [#allocation7], %s29
      %s31 = sshll.u32 [#allocation6], 4
      %s32 = int_to_ptr.vmem [resolvable:$true] %s31
      %37 = dma.hbm_to_vmem [thread:$0]  %s1, 2048, %s32, [#allocation7], 128, 128, 8
    $region9: #{tpu_custom_call.1} parent=1 // pred_fallthru
      _
    // Predicated region
    $region10: #{tpu_custom_call.1} parent=1 // pred_check
      _
    $region11: #{tpu_custom_call.1} parent=1 // pred_check_branch
      %39 = sbr.rel (0) target = $region13
    $region12: #{tpu_custom_call.1} parent=1 // pred_region
      _
    $region13: #{tpu_custom_call.1} parent=1 // pred_fallthru
      _
    // Predicated region
    $region14: #{tpu_custom_call.1} parent=1 // pred_check
      _
    $region15: #{tpu_custom_call.1} parent=1 // pred_check_branch
      %41 = sbr.rel (0) target = $region17
    $region16: #{tpu_custom_call.1} parent=1 // pred_region
      _
    $region17: #{tpu_custom_call.1} parent=1 // pred_fallthru
      _
    // Predicated region
    $region18: #{tpu_custom_call.1} parent=1 // pred_check
      _
    $region19: #{tpu_custom_call.1} parent=1 // pred_check_branch
      %43 = sbr.rel (0) target = $region21
    $region20: #{tpu_custom_call.1} parent=1 // pred_region
      %44 = dma.done [#allocation4], 1024
    $region21: #{tpu_custom_call.1} parent=1 // pred_fallthru
      _
    // Predicated region
    $region22: #{tpu_custom_call.1} parent=1 // pred_check
      _
    $region23: #{tpu_custom_call.1} parent=1 // pred_check_branch
      %46 = sbr.rel (0) target = $region25
    $region24: #{tpu_custom_call.1} parent=1 // pred_region
      %47 = dma.done [#allocation7], 2048
    $region25: #{tpu_custom_call.1} parent=1 // pred_fallthru
      _
    %v48 = vld [vmem:[#allocation3] sm:$0xff]
    %v49 = vld [vmem:[#allocation3 + $0x8] sm:$0xff]
    %v50 = vld [vmem:[#allocation3 + $0x10] sm:$0xff]
    %v51 = vld [vmem:[#allocation3 + $0x18] sm:$0xff]
    %v52 = vld [vmem:[#allocation3 + $0x20] sm:$0xff]
    %v53 = vld [vmem:[#allocation3 + $0x28] sm:$0xff]
    %v54 = vld [vmem:[#allocation3 + $0x30] sm:$0xff]
    %v55 = vld [vmem:[#allocation3 + $0x38] sm:$0xff]
    %v56 = vld [vmem:[#allocation6] sm:$0xff]
    %v57 = vld [vmem:[#allocation6 + $0x8] sm:$0xff]
    %v58 = vld [vmem:[#allocation6 + $0x10] sm:$0xff]
    %v59 = vld [vmem:[#allocation6 + $0x18] sm:$0xff]
    %v60 = vld [vmem:[#allocation6 + $0x20] sm:$0xff]
    %v61 = vld [vmem:[#allocation6 + $0x28] sm:$0xff]
    %v62 = vld [vmem:[#allocation6 + $0x30] sm:$0xff]
    %v63 = vld [vmem:[#allocation6 + $0x38] sm:$0xff]
    %v64 = vld [vmem:[#allocation6 + $0x40] sm:$0xff]
    %v65 = vld [vmem:[#allocation6 + $0x48] sm:$0xff]
    %v66 = vld [vmem:[#allocation6 + $0x50] sm:$0xff]
    %v67 = vld [vmem:[#allocation6 + $0x58] sm:$0xff]
    %v68 = vld [vmem:[#allocation6 + $0x60] sm:$0xff]
    %v69 = vld [vmem:[#allocation6 + $0x68] sm:$0xff]
    %v70 = vld [vmem:[#allocation6 + $0x70] sm:$0xff]
    %v71 = vld [vmem:[#allocation6 + $0x78] sm:$0xff]
    %v72 = vld [vmem:[%s2] sm:$0x1]
    %v73 = vld [vmem:[#allocation2] sm:$0x1]
    %74 = vmatprep.subr.mxu0 0.0
    %75 = vmatpush1.msra.mxu0 %v56
    %76 = vmatprep.subr.mxu0 0.0
    %77 = vmatpush1.msra.mxu0 %v57
    %78 = vmatprep.subr.mxu0 0.0
    %79 = vmatpush1.msra.mxu0 %v58
    %80 = vmatprep.subr.mxu0 0.0
    %81 = vmatpush1.msra.mxu0 %v59
    %82 = vmatprep.subr.mxu0 0.0
    %83 = vmatpush1.msra.mxu0 %v60
    %84 = vmatprep.subr.mxu0 0.0
    %85 = vmatpush1.msra.mxu0 %v61
    %86 = vmatprep.subr.mxu0 0.0
    %87 = vmatpush1.msra.mxu0 %v62
    %88 = vmatprep.subr.mxu0 0.0
    %89 = vmatpush1.msra.mxu0 %v63
    %90 = vmatprep.subr.mxu0 0.0
    %91 = vmatpush1.msra.mxu0 %v64
    %92 = vmatprep.subr.mxu0 0.0
    %93 = vmatpush1.msra.mxu0 %v65
    %94 = vmatprep.subr.mxu0 0.0
    %95 = vmatpush1.msra.mxu0 %v66
    %96 = vmatprep.subr.mxu0 0.0
    %97 = vmatpush1.msra.mxu0 %v67
    %98 = vmatprep.subr.mxu0 0.0
    %99 = vmatpush1.msra.mxu0 %v68
    %100 = vmatprep.subr.mxu0 0.0
    %101 = vmatpush1.msra.mxu0 %v69
    %102 = vmatprep.subr.mxu0 0.0
    %103 = vmatpush1.msra.mxu0 %v70
    %104 = vmatprep.subr.mxu0 0.0
    %105 = vmatpush1.msra.mxu0 %v71
    %106 = vmatprep.subr.mxu0 0.0
    %107 = vmatpush1.msra.mxu0 0.0
    %108 = vmatprep.subr.mxu0 0.0
    %109 = vmatpush1.msra.mxu0 0.0
    %110 = vmatprep.subr.mxu0 0.0
    %111 = vmatpush1.msra.mxu0 0.0
    %112 = vmatprep.subr.mxu0 0.0
    %113 = vmatpush1.msra.mxu0 0.0
    %114 = vmatprep.subr.mxu0 0.0
    %115 = vmatpush1.msra.mxu0 0.0
    %116 = vmatprep.subr.mxu0 0.0
    %117 = vmatpush1.msra.mxu0 0.0
    %118 = vmatprep.subr.mxu0 0.0
    %119 = vmatpush1.msra.mxu0 0.0
    %120 = vmatprep.subr.mxu0 0.0
    %121 = vmatpush1.msra.mxu0 0.0
    %122 = vmatprep.subr.mxu0 0.0
    %123 = vmatpush1.msra.mxu0 0.0
    %124 = vmatprep.subr.mxu0 0.0
    %125 = vmatpush1.msra.mxu0 0.0
    %126 = vmatprep.subr.mxu0 0.0
    %127 = vmatpush1.msra.mxu0 0.0
    %128 = vmatprep.subr.mxu0 0.0
    %129 = vmatpush1.msra.mxu0 0.0
    %130 = vmatprep.subr.mxu0 0.0
    %131 = vmatpush1.msra.mxu0 0.0
    %132 = vmatprep.subr.mxu0 0.0
    %133 = vmatpush1.msra.mxu0 0.0
    %134 = vmatprep.subr.mxu0 0.0
    %135 = vmatpush1.msra.mxu0 0.0
    %136 = vmatprep.subr.mxu0 0.0
    %137 = vmatpush1.msra.mxu0 0.0
    %138 = vmatprep.mubr.f32.mxu0 0.0
    %139 = vmatmul.mubr.f32.gmra.mrb[0].mxu0 %v48
    %v140 = vpop.f32.mrb[0].mxu0
    %v141 = vadd.f32 0.0, %v140
    %v142 = vpop.f32.mrb[0].mxu0
    %143 = vmatprep.mubr.f32.mxu0 0.0
    %144 = vmatmul.mubr.f32.gmra.mrb[0].mxu0 %v49
    %v145 = vpop.f32.mrb[0].mxu0
    %v146 = vadd.f32 0.0, %v145
    %v147 = vpop.f32.mrb[0].mxu0
    %148 = vmatprep.mubr.f32.mxu0 0.0
    %149 = vmatmul.mubr.f32.gmra.mrb[0].mxu0 %v50
    %v150 = vpop.f32.mrb[0].mxu0
    %v151 = vadd.f32 0.0, %v150
    %v152 = vpop.f32.mrb[0].mxu0
    %153 = vmatprep.mubr.f32.mxu0 0.0
    %154 = vmatmul.mubr.f32.gmra.mrb[0].mxu0 %v51
    %v155 = vpop.f32.mrb[0].mxu0
    %v156 = vadd.f32 0.0, %v155
    %v157 = vpop.f32.mrb[0].mxu0
    %158 = vmatprep.mubr.f32.mxu0 0.0
    %159 = vmatmul.mubr.f32.gmra.mrb[0].mxu0 %v52
    %v160 = vpop.f32.mrb[0].mxu0
    %v161 = vadd.f32 0.0, %v160
    %v162 = vpop.f32.mrb[0].mxu0
    %163 = vmatprep.mubr.f32.mxu0 0.0
    %164 = vmatmul.mubr.f32.gmra.mrb[0].mxu0 %v53
    %v165 = vpop.f32.mrb[0].mxu0
    %v166 = vadd.f32 0.0, %v165
    %v167 = vpop.f32.mrb[0].mxu0
    %168 = vmatprep.mubr.f32.mxu0 0.0
    %169 = vmatmul.mubr.f32.gmra.mrb[0].mxu0 %v54
    %v170 = vpop.f32.mrb[0].mxu0
    %v171 = vadd.f32 0.0, %v170
    %v172 = vpop.f32.mrb[0].mxu0
    %173 = vmatprep.mubr.f32.mxu0 0.0
    %174 = vmatmul.mubr.f32.gmra.mrb[0].mxu0 %v55
    %v175 = vpop.f32.mrb[0].mxu0
    %v176 = vadd.f32 0.0, %v175
    %v177 = vpop.f32.mrb[0].mxu0
    %178 = vdwg.mxu0
    %v179 = vmul.f32 %v48, %v48
    %v180 = vmul.f32 %v49, %v49
    %v181 = vmul.f32 %v50, %v50
    %v182 = vmul.f32 %v51, %v51
    %v183 = vmul.f32 %v52, %v52
    %v184 = vmul.f32 %v53, %v53
    %v185 = vmul.f32 %v54, %v54
    %v186 = vmul.f32 %v55, %v55
    %187 = vadd.xlane.f32.xlu0 %v179
    %v188 = vpop.xlane.xlu0 %187
    %189 = vadd.xlane.f32.xlu0 %v180
    %v190 = vpop.xlane.xlu0 %189
    %191 = vadd.xlane.f32.xlu0 %v181
    %v192 = vpop.xlane.xlu0 %191
    %193 = vadd.xlane.f32.xlu0 %v182
    %v194 = vpop.xlane.xlu0 %193
    %195 = vadd.xlane.f32.xlu0 %v183
    %v196 = vpop.xlane.xlu0 %195
    %197 = vadd.xlane.f32.xlu0 %v184
    %v198 = vpop.xlane.xlu0 %197
    %199 = vadd.xlane.f32.xlu0 %v185
    %v200 = vpop.xlane.xlu0 %199
    %201 = vadd.xlane.f32.xlu0 %v186
    %v202 = vpop.xlane.xlu0 %201
    %v203 = vrsqrt.pop %v188
    %v204 = vmul.f32 %v188, %v203
    %vm205 = vcmp.eq.f32.partialorder %v188, inf
    %v206 = vsel %vm205, %v188, %v204
    %vm207 = vcmp.eq.f32.partialorder %v188, 0.0
    %v208 = vand.u32 %v188, 2147483648
    %v209 = vsel %vm207, %v208, %v206
    %v210 = vrsqrt.pop %v190
    %v211 = vmul.f32 %v190, %v210
    %vm212 = vcmp.eq.f32.partialorder %v190, inf
    %v213 = vsel %vm212, %v190, %v211
    %vm214 = vcmp.eq.f32.partialorder %v190, 0.0
    %v215 = vand.u32 %v190, 2147483648
    %v216 = vsel %vm214, %v215, %v213
    %v217 = vrsqrt.pop %v192
    %v218 = vmul.f32 %v192, %v217
    %vm219 = vcmp.eq.f32.partialorder %v192, inf
    %v220 = vsel %vm219, %v192, %v218
    %vm221 = vcmp.eq.f32.partialorder %v192, 0.0
    %v222 = vand.u32 %v192, 2147483648
    %v223 = vsel %vm221, %v222, %v220
    %v224 = vrsqrt.pop %v194
    %v225 = vmul.f32 %v194, %v224
    %vm226 = vcmp.eq.f32.partialorder %v194, inf
    %v227 = vsel %vm226, %v194, %v225
    %vm228 = vcmp.eq.f32.partialorder %v194, 0.0
    %v229 = vand.u32 %v194, 2147483648
    %v230 = vsel %vm228, %v229, %v227
    %v231 = vrsqrt.pop %v196
    %v232 = vmul.f32 %v196, %v231
    %vm233 = vcmp.eq.f32.partialorder %v196, inf
    %v234 = vsel %vm233, %v196, %v232
    %vm235 = vcmp.eq.f32.partialorder %v196, 0.0
    %v236 = vand.u32 %v196, 2147483648
    %v237 = vsel %vm235, %v236, %v234
    %v238 = vrsqrt.pop %v198
    %v239 = vmul.f32 %v198, %v238
    %vm240 = vcmp.eq.f32.partialorder %v198, inf
    %v241 = vsel %vm240, %v198, %v239
    %vm242 = vcmp.eq.f32.partialorder %v198, 0.0
    %v243 = vand.u32 %v198, 2147483648
    %v244 = vsel %vm242, %v243, %v241
    %v245 = vrsqrt.pop %v200
    %v246 = vmul.f32 %v200, %v245
    %vm247 = vcmp.eq.f32.partialorder %v200, inf
    %v248 = vsel %vm247, %v200, %v246
    %vm249 = vcmp.eq.f32.partialorder %v200, 0.0
    %v250 = vand.u32 %v200, 2147483648
    %v251 = vsel %vm249, %v250, %v248
    %v252 = vrsqrt.pop %v202
    %v253 = vmul.f32 %v202, %v252
    %vm254 = vcmp.eq.f32.partialorder %v202, inf
    %v255 = vsel %vm254, %v202, %v253
    %vm256 = vcmp.eq.f32.partialorder %v202, 0.0
    %v257 = vand.u32 %v202, 2147483648
    %v258 = vsel %vm256, %v257, %v255
    %v259 = vmax.f32 %v209, 1e-15
    %v260 = vmax.f32 %v216, 1e-15
    %v261 = vmax.f32 %v223, 1e-15
    %v262 = vmax.f32 %v230, 1e-15
    %v263 = vmax.f32 %v237, 1e-15
    %v264 = vmax.f32 %v244, 1e-15
    %v265 = vmax.f32 %v251, 1e-15
    %v266 = vmax.f32 %v258, 1e-15
    %v267 = vmul.f32 %v141, %v141
    %v268 = vmul.f32 %v146, %v146
    %v269 = vmul.f32 %v151, %v151
    %v270 = vmul.f32 %v156, %v156
    %v271 = vmul.f32 %v161, %v161
    %v272 = vmul.f32 %v166, %v166
    %v273 = vmul.f32 %v171, %v171
    %v274 = vmul.f32 %v176, %v176
    %275 = vadd.xlane.f32.xlu0 %v267
    %v276 = vpop.xlane.xlu0 %275
    %277 = vadd.xlane.f32.xlu0 %v268
    %v278 = vpop.xlane.xlu0 %277
    %279 = vadd.xlane.f32.xlu0 %v269
    %v280 = vpop.xlane.xlu0 %279
    %281 = vadd.xlane.f32.xlu0 %v270
    %v282 = vpop.xlane.xlu0 %281
    %283 = vadd.xlane.f32.xlu0 %v271
    %v284 = vpop.xlane.xlu0 %283
    %285 = vadd.xlane.f32.xlu0 %v272
    %v286 = vpop.xlane.xlu0 %285
    %287 = vadd.xlane.f32.xlu0 %v273
    %v288 = vpop.xlane.xlu0 %287
    %289 = vadd.xlane.f32.xlu0 %v274
    %v290 = vpop.xlane.xlu0 %289
    %v291 = vrsqrt.pop %v276
    %v292 = vmul.f32 %v276, %v291
    %vm293 = vcmp.eq.f32.partialorder %v276, inf
    %v294 = vsel %vm293, %v276, %v292
    %vm295 = vcmp.eq.f32.partialorder %v276, 0.0
    %v296 = vand.u32 %v276, 2147483648
    %v297 = vsel %vm295, %v296, %v294
    %v298 = vrsqrt.pop %v278
    %v299 = vmul.f32 %v278, %v298
    %vm300 = vcmp.eq.f32.partialorder %v278, inf
    %v301 = vsel %vm300, %v278, %v299
    %vm302 = vcmp.eq.f32.partialorder %v278, 0.0
    %v303 = vand.u32 %v278, 2147483648
    %v304 = vsel %vm302, %v303, %v301
    %v305 = vrsqrt.pop %v280
    %v306 = vmul.f32 %v280, %v305
    %vm307 = vcmp.eq.f32.partialorder %v280, inf
    %v308 = vsel %vm307, %v280, %v306
    %vm309 = vcmp.eq.f32.partialorder %v280, 0.0
    %v310 = vand.u32 %v280, 2147483648
    %v311 = vsel %vm309, %v310, %v308
    %v312 = vrsqrt.pop %v282
    %v313 = vmul.f32 %v282, %v312
    %vm314 = vcmp.eq.f32.partialorder %v282, inf
    %v315 = vsel %vm314, %v282, %v313
    %vm316 = vcmp.eq.f32.partialorder %v282, 0.0
    %v317 = vand.u32 %v282, 2147483648
    %v318 = vsel %vm316, %v317, %v315
    %v319 = vrsqrt.pop %v284
    %v320 = vmul.f32 %v284, %v319
    %vm321 = vcmp.eq.f32.partialorder %v284, inf
    %v322 = vsel %vm321, %v284, %v320
    %vm323 = vcmp.eq.f32.partialorder %v284, 0.0
    %v324 = vand.u32 %v284, 2147483648
    %v325 = vsel %vm323, %v324, %v322
    %v326 = vrsqrt.pop %v286
    %v327 = vmul.f32 %v286, %v326
    %vm328 = vcmp.eq.f32.partialorder %v286, inf
    %v329 = vsel %vm328, %v286, %v327
    %vm330 = vcmp.eq.f32.partialorder %v286, 0.0
    %v331 = vand.u32 %v286, 2147483648
    %v332 = vsel %vm330, %v331, %v329
    %v333 = vrsqrt.pop %v288
    %v334 = vmul.f32 %v288, %v333
    %vm335 = vcmp.eq.f32.partialorder %v288, inf
    %v336 = vsel %vm335, %v288, %v334
    %vm337 = vcmp.eq.f32.partialorder %v288, 0.0
    %v338 = vand.u32 %v288, 2147483648
    %v339 = vsel %vm337, %v338, %v336
    %v340 = vrsqrt.pop %v290
    %v341 = vmul.f32 %v290, %v340
    %vm342 = vcmp.eq.f32.partialorder %v290, inf
    %v343 = vsel %vm342, %v290, %v341
    %vm344 = vcmp.eq.f32.partialorder %v290, 0.0
    %v345 = vand.u32 %v290, 2147483648
    %v346 = vsel %vm344, %v345, %v343
    %v347 = vmax.f32 %v297, 1e-15
    %v348 = vmax.f32 %v304, 1e-15
    %v349 = vmax.f32 %v311, 1e-15
    %v350 = vmax.f32 %v318, 1e-15
    %v351 = vmax.f32 %v325, 1e-15
    %v352 = vmax.f32 %v332, 1e-15
    %v353 = vmax.f32 %v339, 1e-15
    %v354 = vmax.f32 %v346, 1e-15
    %v355 = vrcp.pop %v259
    %v356 = vrcp.pop %v260
    %v357 = vrcp.pop %v261
    %v358 = vrcp.pop %v262
    %v359 = vrcp.pop %v263
    %v360 = vrcp.pop %v264
    %v361 = vrcp.pop %v265
    %v362 = vrcp.pop %v266
    %v363 = vmul.f32 %v347, %v355
    %v364 = vmul.f32 %v348, %v356
    %v365 = vmul.f32 %v349, %v357
    %v366 = vmul.f32 %v350, %v358
    %v367 = vmul.f32 %v351, %v359
    %v368 = vmul.f32 %v352, %v360
    %v369 = vmul.f32 %v353, %v361
    %v370 = vmul.f32 %v354, %v362
    %v371 = vmax.f32 %v259, -0.9999999
    %v372 = vmax.f32 %v260, -0.9999999
    %v373 = vmax.f32 %v261, -0.9999999
    %v374 = vmax.f32 %v262, -0.9999999
    %v375 = vmax.f32 %v263, -0.9999999
    %v376 = vmax.f32 %v264, -0.9999999
    %v377 = vmax.f32 %v265, -0.9999999
    %v378 = vmax.f32 %v266, -0.9999999
    %v379 = vmin.f32 %v371, 0.9999999
    %v380 = vmin.f32 %v372, 0.9999999
    %v381 = vmin.f32 %v373, 0.9999999
    %v382 = vmin.f32 %v374, 0.9999999
    %v383 = vmin.f32 %v375, 0.9999999
    %v384 = vmin.f32 %v376, 0.9999999
    %v385 = vmin.f32 %v377, 0.9999999
    %v386 = vmin.f32 %v378, 0.9999999
    %v387 = vadd.f32 %v379, 1.0
    %v388 = vadd.f32 %v380, 1.0
    %v389 = vadd.f32 %v381, 1.0
    %v390 = vadd.f32 %v382, 1.0
    %v391 = vadd.f32 %v383, 1.0
    %v392 = vadd.f32 %v384, 1.0
    %v393 = vadd.f32 %v385, 1.0
    %v394 = vadd.f32 %v386, 1.0
    %v395 = vsub.f32 1.0, %v379
    %v396 = vsub.f32 1.0, %v380
    %v397 = vsub.f32 1.0, %v381
    %v398 = vsub.f32 1.0, %v382
    %v399 = vsub.f32 1.0, %v383
    %v400 = vsub.f32 1.0, %v384
    %v401 = vsub.f32 1.0, %v385
    %v402 = vsub.f32 1.0, %v386
    %v403 = vrcp.pop %v395
    %v404 = vmul.f32 %v387, %v403
    %v405 = vrcp.pop %v396
    %v406 = vmul.f32 %v388, %v405
    %v407 = vrcp.pop %v397
    %v408 = vmul.f32 %v389, %v407
    %v409 = vrcp.pop %v398
    %v410 = vmul.f32 %v390, %v409
    %v411 = vrcp.pop %v399
    %v412 = vmul.f32 %v391, %v411
    %v413 = vrcp.pop %v400
    %v414 = vmul.f32 %v392, %v413
    %v415 = vrcp.pop %v401
    %v416 = vmul.f32 %v393, %v415
    %v417 = vrcp.pop %v402
    %v418 = vmul.f32 %v394, %v417
    %v419 = vlog2.pop %v404
    %v420 = vmul.f32 %v419, 0.6931472
    %v421 = vlog2.pop %v406
    %v422 = vmul.f32 %v421, 0.6931472
    %v423 = vlog2.pop %v408
    %v424 = vmul.f32 %v423, 0.6931472
    %v425 = vlog2.pop %v410
    %v426 = vmul.f32 %v425, 0.6931472
    %v427 = vlog2.pop %v412
    %v428 = vmul.f32 %v427, 0.6931472
    %v429 = vlog2.pop %v414
    %v430 = vmul.f32 %v429, 0.6931472
    %v431 = vlog2.pop %v416
    %v432 = vmul.f32 %v431, 0.6931472
    %v433 = vlog2.pop %v418
    %v434 = vmul.f32 %v433, 0.6931472
    %v435 = vmul.f32 %v420, 0.5
    %v436 = vmul.f32 %v422, 0.5
    %v437 = vmul.f32 %v424, 0.5
    %v438 = vmul.f32 %v426, 0.5
    %v439 = vmul.f32 %v428, 0.5
    %v440 = vmul.f32 %v430, 0.5
    %v441 = vmul.f32 %v432, 0.5
    %v442 = vmul.f32 %v434, 0.5
    %v443 = vmul.f32 %v363, %v435
    %v444 = vmul.f32 %v364, %v436
    %v445 = vmul.f32 %v365, %v437
    %v446 = vmul.f32 %v366, %v438
    %v447 = vmul.f32 %v367, %v439
    %v448 = vmul.f32 %v368, %v440
    %v449 = vmul.f32 %v369, %v441
    %v450 = vmul.f32 %v370, %v442
    %v451 = vmax.f32 %v443, -15.0
    %v452 = vmax.f32 %v444, -15.0
    %v453 = vmax.f32 %v445, -15.0
    %v454 = vmax.f32 %v446, -15.0
    %v455 = vmax.f32 %v447, -15.0
    %v456 = vmax.f32 %v448, -15.0
    %v457 = vmax.f32 %v449, -15.0
    %v458 = vmax.f32 %v450, -15.0
    %v459 = vmin.f32 %v451, 15.0
    %v460 = vmin.f32 %v452, 15.0
    %v461 = vmin.f32 %v453, 15.0
    %v462 = vmin.f32 %v454, 15.0
    %v463 = vmin.f32 %v455, 15.0
    %v464 = vmin.f32 %v456, 15.0
    %v465 = vmin.f32 %v457, 15.0
    %v466 = vmin.f32 %v458, 15.0
    %v467 = vtanh.pop %v459
    %v468 = vtanh.pop %v460
    %v469 = vtanh.pop %v461
    %v470 = vtanh.pop %v462
    %v471 = vtanh.pop %v463
    %v472 = vtanh.pop %v464
    %v473 = vtanh.pop %v465
    %v474 = vtanh.pop %v466
    %v475 = vrcp.pop %v347
    %v476 = vrcp.pop %v348
    %v477 = vrcp.pop %v349
    %v478 = vrcp.pop %v350
    %v479 = vrcp.pop %v351
    %v480 = vrcp.pop %v352
    %v481 = vrcp.pop %v353
    %v482 = vrcp.pop %v354
    %v483 = vmul.f32 %v467, %v475
    %v484 = vmul.f32 %v468, %v476
    %v485 = vmul.f32 %v469, %v477
    %v486 = vmul.f32 %v470, %v478
    %v487 = vmul.f32 %v471, %v479
    %v488 = vmul.f32 %v472, %v480
    %v489 = vmul.f32 %v473, %v481
    %v490 = vmul.f32 %v474, %v482
    %v491 = vmul.f32 %v141, %v483
    %v492 = vmul.f32 %v146, %v484
    %v493 = vmul.f32 %v151, %v485
    %v494 = vmul.f32 %v156, %v486
    %v495 = vmul.f32 %v161, %v487
    %v496 = vmul.f32 %v166, %v488
    %v497 = vmul.f32 %v171, %v489
    %v498 = vmul.f32 %v176, %v490
    %vm499 = vcmp.eq.f32.partialorder %v276, 0.0
    %vm500 = vcmp.eq.f32.partialorder %v278, 0.0
    %vm501 = vcmp.eq.f32.partialorder %v280, 0.0
    %vm502 = vcmp.eq.f32.partialorder %v282, 0.0
    %vm503 = vcmp.eq.f32.partialorder %v284, 0.0
    %vm504 = vcmp.eq.f32.partialorder %v286, 0.0
    %vm505 = vcmp.eq.f32.partialorder %v288, 0.0
    %vm506 = vcmp.eq.f32.partialorder %v290, 0.0
    %v507 = vsel %vm499, 1, 0
    %v508 = vsel %vm500, 1, 0
    %v509 = vsel %vm501, 1, 0
    %v510 = vsel %vm502, 1, 0
    %v511 = vsel %vm503, 1, 0
    %v512 = vsel %vm504, 1, 0
    %v513 = vsel %vm505, 1, 0
    %v514 = vsel %vm506, 1, 0
    %vm515 = vcmp.eq.s32.totalorder %v507, 1
    %vm516 = vcmp.eq.s32.totalorder %v508, 1
    %vm517 = vcmp.eq.s32.totalorder %v509, 1
    %vm518 = vcmp.eq.s32.totalorder %v510, 1
    %vm519 = vcmp.eq.s32.totalorder %v511, 1
    %vm520 = vcmp.eq.s32.totalorder %v512, 1
    %vm521 = vcmp.eq.s32.totalorder %v513, 1
    %vm522 = vcmp.eq.s32.totalorder %v514, 1
    %v523 = vsel %vm515, 0.0, %v491
    %v524 = vsel %vm516, 0.0, %v492
    %v525 = vsel %vm517, 0.0, %v493
    %v526 = vsel %vm518, 0.0, %v494
    %v527 = vsel %vm519, 0.0, %v495
    %v528 = vsel %vm520, 0.0, %v496
    %v529 = vsel %vm521, 0.0, %v497
    %v530 = vsel %vm522, 0.0, %v498
    %v531 = vmul.f32 %v523, %v523
    %v532 = vmul.f32 %v524, %v524
    %v533 = vmul.f32 %v525, %v525
    %v534 = vmul.f32 %v526, %v526
    %v535 = vmul.f32 %v527, %v527
    %v536 = vmul.f32 %v528, %v528
    %v537 = vmul.f32 %v529, %v529
    %v538 = vmul.f32 %v530, %v530
    %539 = vadd.xlane.f32.xlu0 %v531
    %v540 = vpop.xlane.xlu0 %539
    %541 = vadd.xlane.f32.xlu0 %v532
    %v542 = vpop.xlane.xlu0 %541
    %543 = vadd.xlane.f32.xlu0 %v533
    %v544 = vpop.xlane.xlu0 %543
    %545 = vadd.xlane.f32.xlu0 %v534
    %v546 = vpop.xlane.xlu0 %545
    %547 = vadd.xlane.f32.xlu0 %v535
    %v548 = vpop.xlane.xlu0 %547
    %549 = vadd.xlane.f32.xlu0 %v536
    %v550 = vpop.xlane.xlu0 %549
    %551 = vadd.xlane.f32.xlu0 %v537
    %v552 = vpop.xlane.xlu0 %551
    %553 = vadd.xlane.f32.xlu0 %v538
    %v554 = vpop.xlane.xlu0 %553
    %v555 = vrsqrt.pop %v540
    %v556 = vmul.f32 %v540, %v555
    %vm557 = vcmp.eq.f32.partialorder %v540, inf
    %v558 = vsel %vm557, %v540, %v556
    %vm559 = vcmp.eq.f32.partialorder %v540, 0.0
    %v560 = vand.u32 %v540, 2147483648
    %v561 = vsel %vm559, %v560, %v558
    %v562 = vrsqrt.pop %v542
    %v563 = vmul.f32 %v542, %v562
    %vm564 = vcmp.eq.f32.partialorder %v542, inf
    %v565 = vsel %vm564, %v542, %v563
    %vm566 = vcmp.eq.f32.partialorder %v542, 0.0
    %v567 = vand.u32 %v542, 2147483648
    %v568 = vsel %vm566, %v567, %v565
    %v569 = vrsqrt.pop %v544
    %v570 = vmul.f32 %v544, %v569
    %vm571 = vcmp.eq.f32.partialorder %v544, inf
    %v572 = vsel %vm571, %v544, %v570
    %vm573 = vcmp.eq.f32.partialorder %v544, 0.0
    %v574 = vand.u32 %v544, 2147483648
    %v575 = vsel %vm573, %v574, %v572
    %v576 = vrsqrt.pop %v546
    %v577 = vmul.f32 %v546, %v576
    %vm578 = vcmp.eq.f32.partialorder %v546, inf
    %v579 = vsel %vm578, %v546, %v577
    %vm580 = vcmp.eq.f32.partialorder %v546, 0.0
    %v581 = vand.u32 %v546, 2147483648
    %v582 = vsel %vm580, %v581, %v579
    %v583 = vrsqrt.pop %v548
    %v584 = vmul.f32 %v548, %v583
    %vm585 = vcmp.eq.f32.partialorder %v548, inf
    %v586 = vsel %vm585, %v548, %v584
    %vm587 = vcmp.eq.f32.partialorder %v548, 0.0
    %v588 = vand.u32 %v548, 2147483648
    %v589 = vsel %vm587, %v588, %v586
    %v590 = vrsqrt.pop %v550
    %v591 = vmul.f32 %v550, %v590
    %vm592 = vcmp.eq.f32.partialorder %v550, inf
    %v593 = vsel %vm592, %v550, %v591
    %vm594 = vcmp.eq.f32.partialorder %v550, 0.0
    %v595 = vand.u32 %v550, 2147483648
    %v596 = vsel %vm594, %v595, %v593
    %v597 = vrsqrt.pop %v552
    %v598 = vmul.f32 %v552, %v597
    %vm599 = vcmp.eq.f32.partialorder %v552, inf
    %v600 = vsel %vm599, %v552, %v598
    %vm601 = vcmp.eq.f32.partialorder %v552, 0.0
    %v602 = vand.u32 %v552, 2147483648
    %v603 = vsel %vm601, %v602, %v600
    %v604 = vrsqrt.pop %v554
    %v605 = vmul.f32 %v554, %v604
    %vm606 = vcmp.eq.f32.partialorder %v554, inf
    %v607 = vsel %vm606, %v554, %v605
    %vm608 = vcmp.eq.f32.partialorder %v554, 0.0
    %v609 = vand.u32 %v554, 2147483648
    %v610 = vsel %vm608, %v609, %v607
    %v611 = vmax.f32 %v561, 1e-15
    %v612 = vmax.f32 %v568, 1e-15
    %v613 = vmax.f32 %v575, 1e-15
    %v614 = vmax.f32 %v582, 1e-15
    %v615 = vmax.f32 %v589, 1e-15
    %v616 = vmax.f32 %v596, 1e-15
    %v617 = vmax.f32 %v603, 1e-15
    %v618 = vmax.f32 %v610, 1e-15
    %vm619 = vcmp.gt.f32.partialorder %v611, 0.996
    %vm620 = vcmp.gt.f32.partialorder %v612, 0.996
    %vm621 = vcmp.gt.f32.partialorder %v613, 0.996
    %vm622 = vcmp.gt.f32.partialorder %v614, 0.996
    %vm623 = vcmp.gt.f32.partialorder %v615, 0.996
    %vm624 = vcmp.gt.f32.partialorder %v616, 0.996
    %vm625 = vcmp.gt.f32.partialorder %v617, 0.996
    %vm626 = vcmp.gt.f32.partialorder %v618, 0.996
    %v627 = vrcp.pop %v611
    %v628 = vrcp.pop %v612
    %v629 = vrcp.pop %v613
    %v630 = vrcp.pop %v614
    %v631 = vrcp.pop %v615
    %v632 = vrcp.pop %v616
    %v633 = vrcp.pop %v617
    %v634 = vrcp.pop %v618
    %v635 = vmul.f32 %v627, 0.996
    %v636 = vmul.f32 %v628, 0.996
    %v637 = vmul.f32 %v629, 0.996
    %v638 = vmul.f32 %v630, 0.996
    %v639 = vmul.f32 %v631, 0.996
    %v640 = vmul.f32 %v632, 0.996
    %v641 = vmul.f32 %v633, 0.996
    %v642 = vmul.f32 %v634, 0.996
    %v643 = vsel %vm619, %v635, 1.0
    %v644 = vsel %vm620, %v636, 1.0
    %v645 = vsel %vm621, %v637, 1.0
    %v646 = vsel %vm622, %v638, 1.0
    %v647 = vsel %vm623, %v639, 1.0
    %v648 = vsel %vm624, %v640, 1.0
    %v649 = vsel %vm625, %v641, 1.0
    %v650 = vsel %vm626, %v642, 1.0
    %v651 = vmul.f32 %v523, %v643
    %v652 = vmul.f32 %v524, %v644
    %v653 = vmul.f32 %v525, %v645
    %v654 = vmul.f32 %v526, %v646
    %v655 = vmul.f32 %v527, %v647
    %v656 = vmul.f32 %v528, %v648
    %v657 = vmul.f32 %v529, %v649
    %v658 = vmul.f32 %v530, %v650
    %v659 = vmin.f32 %v611, 0.996
    %v660 = vmin.f32 %v612, 0.996
    %v661 = vmin.f32 %v613, 0.996
    %v662 = vmin.f32 %v614, 0.996
    %v663 = vmin.f32 %v615, 0.996
    %v664 = vmin.f32 %v616, 0.996
    %v665 = vmin.f32 %v617, 0.996
    %v666 = vmin.f32 %v618, 0.996
    %v667 = vmul.f32 %v659, %v659
    %v668 = vmul.f32 %v660, %v660
    %v669 = vmul.f32 %v661, %v661
    %v670 = vmul.f32 %v662, %v662
    %v671 = vmul.f32 %v663, %v663
    %v672 = vmul.f32 %v664, %v664
    %v673 = vmul.f32 %v665, %v665
    %v674 = vmul.f32 %v666, %v666
    %v676 = vlaneseq
    %v677 = vshrl.u32 %v676, 7
    %v678 = vsub.s32 0, %v677
    %v679 = vrot.slane %v72, %v678
    %v681 = vmul.f32 %v651, %v679
    %v682 = vmul.f32 %v652, %v679
    %v683 = vmul.f32 %v653, %v679
    %v684 = vmul.f32 %v654, %v679
    %v685 = vmul.f32 %v655, %v679
    %v686 = vmul.f32 %v656, %v679
    %v687 = vmul.f32 %v657, %v679
    %v688 = vmul.f32 %v658, %v679
    %689 = vadd.xlane.f32.xlu0 %v681
    %v690 = vpop.xlane.xlu0 %689
    %691 = vadd.xlane.f32.xlu0 %v682
    %v692 = vpop.xlane.xlu0 %691
    %693 = vadd.xlane.f32.xlu0 %v683
    %v694 = vpop.xlane.xlu0 %693
    %695 = vadd.xlane.f32.xlu0 %v684
    %v696 = vpop.xlane.xlu0 %695
    %697 = vadd.xlane.f32.xlu0 %v685
    %v698 = vpop.xlane.xlu0 %697
    %699 = vadd.xlane.f32.xlu0 %v686
    %v700 = vpop.xlane.xlu0 %699
    %701 = vadd.xlane.f32.xlu0 %v687
    %v702 = vpop.xlane.xlu0 %701
    %703 = vadd.xlane.f32.xlu0 %v688
    %v704 = vpop.xlane.xlu0 %703
    %v705 = vmul.f32 %v690, 2.0
    %v706 = vmul.f32 %v692, 2.0
    %v707 = vmul.f32 %v694, 2.0
    %v708 = vmul.f32 %v696, 2.0
    %v709 = vmul.f32 %v698, 2.0
    %v710 = vmul.f32 %v700, 2.0
    %v711 = vmul.f32 %v702, 2.0
    %v712 = vmul.f32 %v704, 2.0
    %v713 = vadd.f32 %v705, 1.0
    %v714 = vadd.f32 %v706, 1.0
    %v715 = vadd.f32 %v707, 1.0
    %v716 = vadd.f32 %v708, 1.0
    %v717 = vadd.f32 %v709, 1.0
    %v718 = vadd.f32 %v710, 1.0
    %v719 = vadd.f32 %v711, 1.0
    %v720 = vadd.f32 %v712, 1.0
    %v722 = vlaneseq
    %v723 = vshrl.u32 %v722, 7
    %v724 = vsub.s32 0, %v723
    %v725 = vrot.slane %v73, %v724
    %v727 = vadd.f32 %v713, %v725
    %v728 = vadd.f32 %v714, %v725
    %v729 = vadd.f32 %v715, %v725
    %v730 = vadd.f32 %v716, %v725
    %v731 = vadd.f32 %v717, %v725
    %v732 = vadd.f32 %v718, %v725
    %v733 = vadd.f32 %v719, %v725
    %v734 = vadd.f32 %v720, %v725
    %v735 = vsub.f32 1.0, %v667
    %v736 = vsub.f32 1.0, %v668
    %v737 = vsub.f32 1.0, %v669
    %v738 = vsub.f32 1.0, %v670
    %v739 = vsub.f32 1.0, %v671
    %v740 = vsub.f32 1.0, %v672
    %v741 = vsub.f32 1.0, %v673
    %v742 = vsub.f32 1.0, %v674
    %v743 = vmul.f32 %v667, %v725
    %v744 = vmul.f32 %v668, %v725
    %v745 = vmul.f32 %v669, %v725
    %v746 = vmul.f32 %v670, %v725
    %v747 = vmul.f32 %v671, %v725
    %v748 = vmul.f32 %v672, %v725
    %v749 = vmul.f32 %v673, %v725
    %v750 = vmul.f32 %v674, %v725
    %v751 = vadd.f32 %v713, %v743
    %v752 = vadd.f32 %v714, %v744
    %v753 = vadd.f32 %v715, %v745
    %v754 = vadd.f32 %v716, %v746
    %v755 = vadd.f32 %v717, %v747
    %v756 = vadd.f32 %v718, %v748
    %v757 = vadd.f32 %v719, %v749
    %v758 = vadd.f32 %v720, %v750
    %v759 = vmax.f32 %v751, 1e-15
    %v760 = vmax.f32 %v752, 1e-15
    %v761 = vmax.f32 %v753, 1e-15
    %v762 = vmax.f32 %v754, 1e-15
    %v763 = vmax.f32 %v755, 1e-15
    %v764 = vmax.f32 %v756, 1e-15
    %v765 = vmax.f32 %v757, 1e-15
    %v766 = vmax.f32 %v758, 1e-15
    %768 = vset.pattern.permute.xlu0 0
    %769 = vperm.xlu0 %768, %v727
    %v770 = vpop.permute.xlu0 %769
    %773 = vset.pattern.permute.xlu0 0
    %774 = vperm.xlu0 %773, %v728
    %v775 = vpop.permute.xlu0 %774
    %778 = vset.pattern.permute.xlu0 0
    %779 = vperm.xlu0 %778, %v729
    %v780 = vpop.permute.xlu0 %779
    %783 = vset.pattern.permute.xlu0 0
    %784 = vperm.xlu0 %783, %v730
    %v785 = vpop.permute.xlu0 %784
    %788 = vset.pattern.permute.xlu0 0
    %789 = vperm.xlu0 %788, %v731
    %v790 = vpop.permute.xlu0 %789
    %793 = vset.pattern.permute.xlu0 0
    %794 = vperm.xlu0 %793, %v732
    %v795 = vpop.permute.xlu0 %794
    %798 = vset.pattern.permute.xlu0 0
    %799 = vperm.xlu0 %798, %v733
    %v800 = vpop.permute.xlu0 %799
    %803 = vset.pattern.permute.xlu0 0
    %804 = vperm.xlu0 %803, %v734
    %v805 = vpop.permute.xlu0 %804
    %v807 = vmul.f32 %v770, %v651
    %v808 = vmul.f32 %v775, %v652
    %v809 = vmul.f32 %v780, %v653
    %v810 = vmul.f32 %v785, %v654
    %v811 = vmul.f32 %v790, %v655
    %v812 = vmul.f32 %v795, %v656
    %v813 = vmul.f32 %v800, %v657
    %v814 = vmul.f32 %v805, %v658
    %v815 = vmul.f32 %v735, %v679
    %v816 = vmul.f32 %v736, %v679
    %v817 = vmul.f32 %v737, %v679
    %v818 = vmul.f32 %v738, %v679
    %v819 = vmul.f32 %v739, %v679
    %v820 = vmul.f32 %v740, %v679
    %v821 = vmul.f32 %v741, %v679
    %v822 = vmul.f32 %v742, %v679
    %v823 = vadd.f32 %v807, %v815
    %v824 = vadd.f32 %v808, %v816
    %v825 = vadd.f32 %v809, %v817
    %v826 = vadd.f32 %v810, %v818
    %v827 = vadd.f32 %v811, %v819
    %v828 = vadd.f32 %v812, %v820
    %v829 = vadd.f32 %v813, %v821
    %v830 = vadd.f32 %v814, %v822
    %v831 = vrcp.pop %v759
    %v832 = vrcp.pop %v760
    %v833 = vrcp.pop %v761
    %v834 = vrcp.pop %v762
    %v835 = vrcp.pop %v763
    %v836 = vrcp.pop %v764
    %v837 = vrcp.pop %v765
    %v838 = vrcp.pop %v766
    %840 = vset.pattern.permute.xlu0 0
    %841 = vperm.xlu0 %840, %v831
    %v842 = vpop.permute.xlu0 %841
    %845 = vset.pattern.permute.xlu0 0
    %846 = vperm.xlu0 %845, %v832
    %v847 = vpop.permute.xlu0 %846
    %850 = vset.pattern.permute.xlu0 0
    %851 = vperm.xlu0 %850, %v833
    %v852 = vpop.permute.xlu0 %851
    %855 = vset.pattern.permute.xlu0 0
    %856 = vperm.xlu0 %855, %v834
    %v857 = vpop.permute.xlu0 %856
    %860 = vset.pattern.permute.xlu0 0
    %861 = vperm.xlu0 %860, %v835
    %v862 = vpop.permute.xlu0 %861
    %865 = vset.pattern.permute.xlu0 0
    %866 = vperm.xlu0 %865, %v836
    %v867 = vpop.permute.xlu0 %866
    %870 = vset.pattern.permute.xlu0 0
    %871 = vperm.xlu0 %870, %v837
    %v872 = vpop.permute.xlu0 %871
    %875 = vset.pattern.permute.xlu0 0
    %876 = vperm.xlu0 %875, %v838
    %v877 = vpop.permute.xlu0 %876
    %v879 = vmul.f32 %v823, %v842
    %v880 = vmul.f32 %v824, %v847
    %v881 = vmul.f32 %v825, %v852
    %v882 = vmul.f32 %v826, %v857
    %v883 = vmul.f32 %v827, %v862
    %v884 = vmul.f32 %v828, %v867
    %v885 = vmul.f32 %v829, %v872
    %v886 = vmul.f32 %v830, %v877
    %v887 = vmul.f32 %v879, %v879
    %v888 = vmul.f32 %v880, %v880
    %v889 = vmul.f32 %v881, %v881
    %v890 = vmul.f32 %v882, %v882
    %v891 = vmul.f32 %v883, %v883
    %v892 = vmul.f32 %v884, %v884
    %v893 = vmul.f32 %v885, %v885
    %v894 = vmul.f32 %v886, %v886
    %895 = vadd.xlane.f32.xlu0 %v887
    %v896 = vpop.xlane.xlu0 %895
    %897 = vadd.xlane.f32.xlu0 %v888
    %v898 = vpop.xlane.xlu0 %897
    %899 = vadd.xlane.f32.xlu0 %v889
    %v900 = vpop.xlane.xlu0 %899
    %901 = vadd.xlane.f32.xlu0 %v890
    %v902 = vpop.xlane.xlu0 %901
    %903 = vadd.xlane.f32.xlu0 %v891
    %v904 = vpop.xlane.xlu0 %903
    %905 = vadd.xlane.f32.xlu0 %v892
    %v906 = vpop.xlane.xlu0 %905
    %907 = vadd.xlane.f32.xlu0 %v893
    %v908 = vpop.xlane.xlu0 %907
    %909 = vadd.xlane.f32.xlu0 %v894
    %v910 = vpop.xlane.xlu0 %909
    %v911 = vrsqrt.pop %v896
    %v912 = vmul.f32 %v896, %v911
    %vm913 = vcmp.eq.f32.partialorder %v896, inf
    %v914 = vsel %vm913, %v896, %v912
    %vm915 = vcmp.eq.f32.partialorder %v896, 0.0
    %v916 = vand.u32 %v896, 2147483648
    %v917 = vsel %vm915, %v916, %v914
    %v918 = vrsqrt.pop %v898
    %v919 = vmul.f32 %v898, %v918
    %vm920 = vcmp.eq.f32.partialorder %v898, inf
    %v921 = vsel %vm920, %v898, %v919
    %vm922 = vcmp.eq.f32.partialorder %v898, 0.0
    %v923 = vand.u32 %v898, 2147483648
    %v924 = vsel %vm922, %v923, %v921
    %v925 = vrsqrt.pop %v900
    %v926 = vmul.f32 %v900, %v925
    %vm927 = vcmp.eq.f32.partialorder %v900, inf
    %v928 = vsel %vm927, %v900, %v926
    %vm929 = vcmp.eq.f32.partialorder %v900, 0.0
    %v930 = vand.u32 %v900, 2147483648
    %v931 = vsel %vm929, %v930, %v928
    %v932 = vrsqrt.pop %v902
    %v933 = vmul.f32 %v902, %v932
    %vm934 = vcmp.eq.f32.partialorder %v902, inf
    %v935 = vsel %vm934, %v902, %v933
    %vm936 = vcmp.eq.f32.partialorder %v902, 0.0
    %v937 = vand.u32 %v902, 2147483648
    %v938 = vsel %vm936, %v937, %v935
    %v939 = vrsqrt.pop %v904
    %v940 = vmul.f32 %v904, %v939
    %vm941 = vcmp.eq.f32.partialorder %v904, inf
    %v942 = vsel %vm941, %v904, %v940
    %vm943 = vcmp.eq.f32.partialorder %v904, 0.0
    %v944 = vand.u32 %v904, 2147483648
    %v945 = vsel %vm943, %v944, %v942
    %v946 = vrsqrt.pop %v906
    %v947 = vmul.f32 %v906, %v946
    %vm948 = vcmp.eq.f32.partialorder %v906, inf
    %v949 = vsel %vm948, %v906, %v947
    %vm950 = vcmp.eq.f32.partialorder %v906, 0.0
    %v951 = vand.u32 %v906, 2147483648
    %v952 = vsel %vm950, %v951, %v949
    %v953 = vrsqrt.pop %v908
    %v954 = vmul.f32 %v908, %v953
    %vm955 = vcmp.eq.f32.partialorder %v908, inf
    %v956 = vsel %vm955, %v908, %v954
    %vm957 = vcmp.eq.f32.partialorder %v908, 0.0
    %v958 = vand.u32 %v908, 2147483648
    %v959 = vsel %vm957, %v958, %v956
    %v960 = vrsqrt.pop %v910
    %v961 = vmul.f32 %v910, %v960
    %vm962 = vcmp.eq.f32.partialorder %v910, inf
    %v963 = vsel %vm962, %v910, %v961
    %vm964 = vcmp.eq.f32.partialorder %v910, 0.0
    %v965 = vand.u32 %v910, 2147483648
    %v966 = vsel %vm964, %v965, %v963
    %v967 = vmax.f32 %v917, 1e-15
    %v968 = vmax.f32 %v924, 1e-15
    %v969 = vmax.f32 %v931, 1e-15
    %v970 = vmax.f32 %v938, 1e-15
    %v971 = vmax.f32 %v945, 1e-15
    %v972 = vmax.f32 %v952, 1e-15
    %v973 = vmax.f32 %v959, 1e-15
    %v974 = vmax.f32 %v966, 1e-15
    %vm975 = vcmp.gt.f32.partialorder %v967, 0.996
    %vm976 = vcmp.gt.f32.partialorder %v968, 0.996
    %vm977 = vcmp.gt.f32.partialorder %v969, 0.996
    %vm978 = vcmp.gt.f32.partialorder %v970, 0.996
    %vm979 = vcmp.gt.f32.partialorder %v971, 0.996
    %vm980 = vcmp.gt.f32.partialorder %v972, 0.996
    %vm981 = vcmp.gt.f32.partialorder %v973, 0.996
    %vm982 = vcmp.gt.f32.partialorder %v974, 0.996
    %v983 = vrcp.pop %v967
    %v984 = vrcp.pop %v968
    %v985 = vrcp.pop %v969
    %v986 = vrcp.pop %v970
    %v987 = vrcp.pop %v971
    %v988 = vrcp.pop %v972
    %v989 = vrcp.pop %v973
    %v990 = vrcp.pop %v974
    %v991 = vmul.f32 %v983, 0.996
    %v992 = vmul.f32 %v984, 0.996
    %v993 = vmul.f32 %v985, 0.996
    %v994 = vmul.f32 %v986, 0.996
    %v995 = vmul.f32 %v987, 0.996
    %v996 = vmul.f32 %v988, 0.996
    %v997 = vmul.f32 %v989, 0.996
    %v998 = vmul.f32 %v990, 0.996
    %v999 = vsel %vm975, %v991, 1.0
    %v1000 = vsel %vm976, %v992, 1.0
    %v1001 = vsel %vm977, %v993, 1.0
    %v1002 = vsel %vm978, %v994, 1.0
    %v1003 = vsel %vm979, %v995, 1.0
    %v1004 = vsel %vm980, %v996, 1.0
    %v1005 = vsel %vm981, %v997, 1.0
    %v1006 = vsel %vm982, %v998, 1.0
    %v1007 = vmul.f32 %v879, %v999
    %v1008 = vmul.f32 %v880, %v1000
    %v1009 = vmul.f32 %v881, %v1001
    %v1010 = vmul.f32 %v882, %v1002
    %v1011 = vmul.f32 %v883, %v1003
    %v1012 = vmul.f32 %v884, %v1004
    %v1013 = vmul.f32 %v885, %v1005
    %v1014 = vmul.f32 %v886, %v1006
    %1015 = vst [vmem:[#allocation8] sm:$0xff] %v1007
    %1016 = vst [vmem:[#allocation8 + $0x8] sm:$0xff] %v1008
    %1017 = vst [vmem:[#allocation8 + $0x10] sm:$0xff] %v1009
    %1018 = vst [vmem:[#allocation8 + $0x18] sm:$0xff] %v1010
    %1019 = vst [vmem:[#allocation8 + $0x20] sm:$0xff] %v1011
    %1020 = vst [vmem:[#allocation8 + $0x28] sm:$0xff] %v1012
    %1021 = vst [vmem:[#allocation8 + $0x30] sm:$0xff] %v1013
    %1022 = vst [vmem:[#allocation8 + $0x38] sm:$0xff] %v1014
    // Predicated region
    $region26: #{tpu_custom_call.1} parent=1 // pred_check
      _
    $region27: #{tpu_custom_call.1} parent=1 // pred_check_branch
      %1024 = sbr.rel (0) target = $region29
    $region28: #{tpu_custom_call.1} parent=1 // pred_region
      %s1026 = ssub.s32 1024, 1024
      %1027 = vsyncadd [#allocation5], %s1026
      %s1028 = sshll.u32 [#allocation8], 4
      %s1029 = int_to_ptr.vmem [resolvable:$true] %s1028
      %1034 = dma.vmem_to_hbm [thread:$0]  %s1029, 1024, %s4, [#allocation5], 128, 128, 8
    $region29: #{tpu_custom_call.1} parent=1 // pred_fallthru
      _
    // Predicated region
    $region30: #{tpu_custom_call.1} parent=1 // pred_check
      _
    $region31: #{tpu_custom_call.1} parent=1 // pred_check_branch
      %1036 = sbr.rel (0) target = $region33
    $region32: #{tpu_custom_call.1} parent=1 // pred_region
      %1037 = dma.done [#allocation5], 1024
    $region33: #{tpu_custom_call.1} parent=1 // pred_fallthru
      _
    %1038 = vsyncpa [#allocation4], 1
    %1039 = vsyncpa [#allocation7], 1
    %1040 = vsyncpa [#allocation5], 1

</llo_original>
